<compile_context>
chip_gen: v6e
topology: v6e:2x2x1
jax: 0.10.0
libtpu: 0.0.40
codegen_flags: <defaults>
</compile_context>

<pallas_src>
import functools

import numpy as np
import jax
import jax.numpy as jnp
from jax import lax
from jax.experimental import pallas as pl
from jax.experimental.pallas import tpu as pltpu

S_LIST = (1, 2, 3, 6)
SS_TOTAL = sum(s * s for s in S_LIST)          # 1 + 4 + 9 + 36 = 50


def _adaptive_pool_matrix(H, S):
    """Row-stochastic matrix P (S, H) replicating torch AdaptiveAvgPool2d bins."""
    P = np.zeros((S, H), dtype=np.float32)
    for i in range(S):
        start = (i * H) // S
        end = -((-(i + 1) * H) // S)           # ceil((i+1)*H/S)
        P[i, start:end] = 1.0 / (end - start)
    return jnp.asarray(P)


def _lspms_kernel(xfull_ref, xq_ref, wc_ref, wsum_ref, wall_ref,
                  out_ref, mm2_ref, *, hw_real):
    """Grid = (B, HW_pad // Tq).  Row-tiled softmax + accumulated mm2."""
    q = pl.program_id(1)
    nq = pl.num_programs(1)
    hw_pad = xfull_ref.shape[-1]
    tq = xq_ref.shape[-1]

    @pl.when(q == 0)
    def _init():
        mm2_ref[...] = jnp.zeros_like(mm2_ref)

    x_full = xfull_ref[0]                      # (C, HWp)  bf16  (resident)
    xq = xq_ref[0]                             # (C, Tq)   bf16

    # gram tile (Tq, HWp): bf16 operands, f32 accumulation on the MXU.
    gram = lax.dot_general(xq, x_full, (((0,), (0,)), ((), ())),
                           preferred_element_type=jnp.float32)
    if hw_pad > hw_real:                       # mask padded columns (static)
        col = lax.broadcasted_iota(jnp.int32, (tq, hw_pad), 1)
        gram = jnp.where(col < hw_real, gram, jnp.float32(-1e30))

    # exact row softmax (rows are complete -> no online-softmax bookkeeping)
    m = jnp.max(gram, axis=-1, keepdims=True)
    e = jnp.exp(gram - m)
    inv = pl.reciprocal(jnp.sum(e, axis=-1, keepdims=True), approx=True)
    p = (e * inv).astype(jnp.bfloat16)         # (Tq, HWp)

    # all four per-scale 1x1 convs at once: (50, Tq)
    xc = jnp.dot(wc_ref[...], xq, preferred_element_type=jnp.float32)

    # accumulate mm2 = x_conv @ softmax(gram) over row tiles
    mm2_ref[...] += jnp.dot(xc.astype(jnp.bfloat16), p,
                            preferred_element_type=jnp.float32)

    @pl.when(q == nq - 1)
    def _finalize():
        # out = (sum_j wfuse_j) @ x  +  (wfuse_S @ relu(GP_S)) @ mm2
        acc = jnp.dot(wsum_ref[...], x_full, preferred_element_type=jnp.float32)
        acc = acc + jnp.dot(wall_ref[0], mm2_ref[...],
                            preferred_element_type=jnp.float32)
        out_ref[0] = acc


def _pick_tq(hw_pad):
    """Largest row tile (multiple of 128) that divides hw_pad and keeps the
    per-tile f32 softmax buffers comfortably inside the v7x VMEM budget."""
    for cand in (1024, 512, 256, 128):
        if hw_pad % cand == 0 and 3 * cand * hw_pad * 4 <= (24 << 20):
            return cand
    return hw_pad


def lspms_forward(x, params):
    """x: (B, C, H, W) float32.  Returns (B, C, H, W) float32."""
    B, C, H, W = x.shape
    HW = H * W
    HWp = ((HW + 127) // 128) * 128            # lane-dense spatial dim
    x_flat = x.reshape(B, C, HW).astype(jnp.float32)

    # ---- tiny plain-JAX glue: pooling + GP + fusion-weight reassociation ----
    wfuse = params['wfuse']                    # (C, 5C)
    wgp_all = params['wgp_all']                # (4, C, C)

    w_sum = wfuse[:, 0:C]
    for j in range(1, 5):
        w_sum = w_sum + wfuse[:, j * C:(j + 1) * C]          # (C, C)

    w_cols = []
    for idx, S in enumerate(S_LIST):
        Ph = _adaptive_pool_matrix(H, S)
        Pw = _adaptive_pool_matrix(W, S)
        pooled = jnp.einsum('sh,bchw,tw->bcst', Ph, x, Pw).reshape(B, C, S * S)
        gp = jnp.maximum(jnp.einsum('ij,bjk->bik', wgp_all[idx], pooled), 0.0)
        wf_s = wfuse[:, (idx + 1) * C:(idx + 2) * C]
        w_cols.append(jnp.einsum('ij,bjk->bik', wf_s, gp))
    w_all = jnp.concatenate(w_cols, axis=-1).astype(jnp.float32)   # (B, C, 50)

    wc_all = jnp.concatenate([params[f'wc{S}'] for S in S_LIST], axis=0)  # (50, C)

    # pad spatial dim with zeros (padded cols are masked in-kernel, padded rows
    # contribute zero to mm2 because their x_conv columns are zero).
    if HWp != HW:
        x_flat = jnp.pad(x_flat, ((0, 0), (0, 0), (0, HWp - HW)))
    x_b = x_flat.astype(jnp.bfloat16)
    wc_b = wc_all.astype(jnp.bfloat16)
    wsum_b = w_sum.astype(jnp.bfloat16)

    tq = _pick_tq(HWp)
    nq = HWp // tq

    kernel = functools.partial(_lspms_kernel, hw_real=HW)

    # explicit scoped-VMEM budget (double-buffered blocks + softmax tiles + scratch)
    vmem_bytes = (2 * C * HWp * 2              # resident x (bf16), double-buffered
                  + 2 * C * tq * 2             # tiled x (bf16)
                  + 2 * C * HWp * 4            # f32 output block
                  + 3 * tq * HWp * 4           # gram / exp / prob tiles
                  + 8 * ((SS_TOTAL + 7) // 8) * HWp * 4   # mm2 scratch
                  + 2 * (SS_TOTAL * C * 2 + C * C * 2 + C * SS_TOTAL * 4)
                  + (4 << 20))                 # headroom
    vmem_limit = int(min(max(vmem_bytes, 32 << 20), 64 << 20))

    out = pl.pallas_call(
        kernel,
        out_shape=jax.ShapeDtypeStruct((B, C, HWp), jnp.float32),
        grid_spec=pltpu.PrefetchScalarGridSpec(
            num_scalar_prefetch=0,
            grid=(B, nq),
            in_specs=[
                pl.BlockSpec((1, C, HWp), lambda b, q: (b, 0, 0)),      # full x (resident)
                pl.BlockSpec((1, C, tq), lambda b, q: (b, 0, q)),       # x row tile
                pl.BlockSpec((SS_TOTAL, C), lambda b, q: (0, 0)),       # stacked 1x1 convs
                pl.BlockSpec((C, C), lambda b, q: (0, 0)),              # summed fusion weight
                pl.BlockSpec((1, C, SS_TOTAL), lambda b, q: (b, 0, 0)),  # folded GP/fusion
            ],
            out_specs=pl.BlockSpec((1, C, HWp), lambda b, q: (b, 0, 0)),
            scratch_shapes=[pltpu.VMEM((SS_TOTAL, HWp), jnp.float32)],
        ),
        compiler_params=pltpu.CompilerParams(
            dimension_semantics=("parallel", "arbitrary"),
            vmem_limit_bytes=vmem_limit,
        ),
    )(x_b, x_b, wc_b, wsum_b, w_all)

    return out[:, :, :HW].reshape(B, C, H, W)


def init_params(key, C):
    """Deterministic synthetic parameters matching the PyTorch module shapes."""
    keys = jax.random.split(key, 10)
    params = {}
    # LSPMSLayer.conv : Conv2d(C, S*S, 1, bias=False) -> weight (S*S, C)
    for i, S in enumerate(S_LIST):
        params[f'wc{S}'] = (jax.random.normal(keys[i], (S * S, C), jnp.float32)
                            * (1.0 / np.sqrt(C)))
    # LSPMSLayer.GP_1X1 : Conv2d(C, C, 1, bias=False), one per scale
    wgp = [jax.random.normal(keys[4 + i], (C, C), jnp.float32) * (1.0 / np.sqrt(C))
           for i in range(4)]
    params['wgp_all'] = jnp.stack(wgp, axis=0)                 # (4, C, C)
    # LSPMS.conv : Conv2d(5C, C, 1, bias=False) -> weight (C, 5C)
    params['wfuse'] = (jax.random.normal(keys[8], (C, 5 * C), jnp.float32)
                       * (1.0 / np.sqrt(5 * C)))
    return params


if __name__ == "__main__":
    B, C, H, W = 2, 4, 16, 16
    key = jax.random.PRNGKey(0)
    k_x, k_p = jax.random.split(key)
    x = jax.random.normal(k_x, (B, C, H, W), jnp.float32) * 0.5
    params = init_params(k_p, C)

    out = lspms_forward(x, params)
    out = jax.block_until_ready(out)

    assert out.shape == (B, C, H, W)
    assert bool(jnp.all(jnp.isfinite(out)))
    print("KERNEL_OK")
</pallas_src>

<mosaic_0001>
module attributes {stable_mosaic.version = 11 : i64} {
  func.func @_lspms_kernel(%arg0: i32, %arg1: i32, %arg2: memref<1x4x256xbf16, #tpu.memory_space<vmem>>, %arg3: memref<1x4x256xbf16, #tpu.memory_space<vmem>>, %arg4: memref<50x4xbf16, #tpu.memory_space<vmem>>, %arg5: memref<4x4xbf16, #tpu.memory_space<vmem>>, %arg6: memref<1x4x50xf32, #tpu.memory_space<vmem>>, %arg7: memref<1x4x256xf32, #tpu.memory_space<vmem>>, %arg8: memref<50x256xf32, #tpu.memory_space<vmem>>) attributes {dimension_semantics = [#tpu.dimension_semantics<parallel>, #tpu.dimension_semantics<arbitrary>], iteration_bounds = array<i64: 2, 1>, scalar_prefetch = 0 : i64, scratch_operands = 1 : i64, tpu.core_type = #tpu.core_type<tc>, window_params = [{transform_indices = @transform_0, window_bounds = array<i64: 1, 4, 256>}, {transform_indices = @transform_1, window_bounds = array<i64: 1, 4, 256>}, {pipeline_mode = #tpu.pipeline_mode<synchronous>, transform_indices = @transform_2, window_bounds = array<i64: 50, 4>}, {pipeline_mode = #tpu.pipeline_mode<synchronous>, transform_indices = @transform_3, window_bounds = array<i64: 4, 4>}, {transform_indices = @transform_4, window_bounds = array<i64: 1, 4, 50>}, {transform_indices = @transform_5, window_bounds = array<i64: 1, 4, 256>}]} {
    %c0_i32 = arith.constant 0 : i32
    %0 = arith.cmpi eq, %arg1, %c0_i32 : i32
    %1 = arith.extui %0 : i1 to i32
    %c0_i32_0 = arith.constant 0 : i32
    %2 = arith.cmpi ne, %1, %c0_i32_0 : i32
    scf.if %2 {
      %cst_18 = arith.constant 0.000000e+00 : f32
      %29 = vector.broadcast %cst_18 : f32 to vector<50x256xf32>
      %c0_19 = arith.constant 0 : index
      %c0_20 = arith.constant 0 : index
      %30 = vector.load %arg8[%c0_19, %c0_20] : memref<50x256xf32, #tpu.memory_space<vmem>>, vector<50x256xf32>
      tpu.vector_store %arg8[%c0_19, %c0_20], %29 {strides = array<i32>} : memref<50x256xf32, #tpu.memory_space<vmem>>, vector<50x256xf32>,
    } else {
    }
    %c0 = arith.constant 0 : index
    %c0_1 = arith.constant 0 : index
    %c0_2 = arith.constant 0 : index
    %3 = vector.load %arg2[%c0, %c0_1, %c0_2] : memref<1x4x256xbf16, #tpu.memory_space<vmem>>, vector<1x4x256xbf16>
    %4 = vector.shape_cast %3 : vector<1x4x256xbf16> to vector<4x256xbf16>
    %c0_3 = arith.constant 0 : index
    %c0_4 = arith.constant 0 : index
    %c0_5 = arith.constant 0 : index
    %5 = vector.load %arg3[%c0_3, %c0_4, %c0_5] : memref<1x4x256xbf16, #tpu.memory_space<vmem>>, vector<1x4x256xbf16>
    %6 = vector.shape_cast %5 : vector<1x4x256xbf16> to vector<4x256xbf16>
    %cst = arith.constant dense<0.000000e+00> : vector<256x256xf32>
    %7 = tpu.matmul %6, %4, %cst {dimension_numbers = #tpu.dot_dimension_numbers<[0], [0], [1], [1], [0, 1, 1, 1], [], []>} : vector<4x256xbf16>, vector<4x256xbf16>, vector<256x256xf32> -> vector<256x256xf32>
    %cst_6 = arith.constant dense<0xFF800000> : vector<256xf32>
    %8 = vector.multi_reduction <maximumf>, %7, %cst_6 [1] : vector<256x256xf32> to vector<256xf32>
    %9 = vector.shape_cast %8 : vector<256xf32> to vector<256x1xf32>
    %10 = vector.broadcast %9 : vector<256x1xf32> to vector<256x256xf32>
    %11 = arith.subf %7, %10 : vector<256x256xf32>
    %12 = math.exp %11 : vector<256x256xf32>
    %cst_7 = arith.constant dense<0.000000e+00> : vector<256xf32>
    %13 = vector.multi_reduction <add>, %12, %cst_7 [1] : vector<256x256xf32> to vector<256xf32>
    %14 = vector.shape_cast %13 : vector<256xf32> to vector<256x1xf32>
    %15 = tpu.reciprocal %14 {approx = true} : vector<256x1xf32> -> vector<256x1xf32>
    %16 = vector.broadcast %15 : vector<256x1xf32> to vector<256x256xf32>
    %17 = arith.mulf %12, %16 : vector<256x256xf32>
    %18 = arith.truncf %17 : vector<256x256xf32> to vector<256x256xbf16>
    %c0_8 = arith.constant 0 : index
    %c0_9 = arith.constant 0 : index
    %19 = vector.load %arg4[%c0_8, %c0_9] : memref<50x4xbf16, #tpu.memory_space<vmem>>, vector<50x4xbf16>
    %cst_10 = arith.constant dense<0.000000e+00> : vector<50x256xf32>
    %20 = tpu.matmul %19, %6, %cst_10 {dimension_numbers = #tpu.dot_dimension_numbers<[1], [0], [0], [1], [0, 0, 1, 1], [], []>} : vector<50x4xbf16>, vector<4x256xbf16>, vector<50x256xf32> -> vector<50x256xf32>
    %c0_11 = arith.constant 0 : index
    %c0_12 = arith.constant 0 : index
    %21 = vector.load %arg8[%c0_11, %c0_12] : memref<50x256xf32, #tpu.memory_space<vmem>>, vector<50x256xf32>
    %22 = arith.truncf %20 : vector<50x256xf32> to vector<50x256xbf16>
    %cst_13 = arith.constant dense<0.000000e+00> : vector<50x256xf32>
    %23 = tpu.matmul %22, %18, %cst_13 {dimension_numbers = #tpu.dot_dimension_numbers<[1], [0], [0], [1], [0, 0, 1, 1], [], []>} : vector<50x256xbf16>, vector<256x256xbf16>, vector<50x256xf32> -> vector<50x256xf32>
    %24 = arith.addf %21, %23 : vector<50x256xf32>
    %c0_14 = arith.constant 0 : index
    %c0_15 = arith.constant 0 : index
    %25 = vector.load %arg8[%c0_14, %c0_15] : memref<50x256xf32, #tpu.memory_space<vmem>>, vector<50x256xf32>
    tpu.vector_store %arg8[%c0_14, %c0_15], %24 {strides = array<i32>} : memref<50x256xf32, #tpu.memory_space<vmem>>, vector<50x256xf32>,
    %c0_i32_16 = arith.constant 0 : i32
    %26 = arith.cmpi eq, %arg1, %c0_i32_16 : i32
    %27 = arith.extui %26 : i1 to i32
    %c0_i32_17 = arith.constant 0 : i32
    %28 = arith.cmpi ne, %27, %c0_i32_17 : i32
    scf.if %28 {
      %c0_18 = arith.constant 0 : index
      %c0_19 = arith.constant 0 : index
      %29 = vector.load %arg5[%c0_18, %c0_19] : memref<4x4xbf16, #tpu.memory_space<vmem>>, vector<4x4xbf16>
      %cst_20 = arith.constant dense<0.000000e+00> : vector<4x256xf32>
      %30 = tpu.matmul %29, %4, %cst_20 {dimension_numbers = #tpu.dot_dimension_numbers<[1], [0], [0], [1], [0, 0, 1, 1], [], []>} : vector<4x4xbf16>, vector<4x256xbf16>, vector<4x256xf32> -> vector<4x256xf32>
      %c0_21 = arith.constant 0 : index
      %c0_22 = arith.constant 0 : index
      %c0_23 = arith.constant 0 : index
      %31 = vector.load %arg6[%c0_21, %c0_22, %c0_23] : memref<1x4x50xf32, #tpu.memory_space<vmem>>, vector<1x4x50xf32>
      %32 = vector.shape_cast %31 : vector<1x4x50xf32> to vector<4x50xf32>
      %c0_24 = arith.constant 0 : index
      %c0_25 = arith.constant 0 : index
      %33 = vector.load %arg8[%c0_24, %c0_25] : memref<50x256xf32, #tpu.memory_space<vmem>>, vector<50x256xf32>
      %cst_26 = arith.constant dense<0.000000e+00> : vector<4x256xf32>
      %34 = tpu.matmul %32, %33, %cst_26 {dimension_numbers = #tpu.dot_dimension_numbers<[1], [0], [0], [1], [0, 0, 1, 1], [], []>} : vector<4x50xf32>, vector<50x256xf32>, vector<4x256xf32> -> vector<4x256xf32>
      %35 = arith.addf %30, %34 : vector<4x256xf32>
      %c0_27 = arith.constant 0 : index
      %c0_28 = arith.constant 0 : index
      %c0_29 = arith.constant 0 : index
      %36 = vector.load %arg7[%c0_27, %c0_28, %c0_29] : memref<1x4x256xf32, #tpu.memory_space<vmem>>, vector<1x4x256xf32>
      %37 = vector.shape_cast %36 : vector<1x4x256xf32> to vector<4x256xf32>
      %38 = vector.shape_cast %35 : vector<4x256xf32> to vector<1x4x256xf32>
      tpu.vector_store %arg7[%c0_27, %c0_28, %c0_29], %38 {strides = array<i32>} : memref<1x4x256xf32, #tpu.memory_space<vmem>>, vector<1x4x256xf32>,
    } else {
    }
    return
  }
  func.func @transform_0(%arg0: i32, %arg1: i32) -> (i32, i32, i32) {
    %c0_i32 = arith.constant 0 : i32
    %c0_i32_0 = arith.constant 0 : i32
    %c0_i32_1 = arith.constant 0 : i32
    return %arg0, %c0_i32, %c0_i32_0 : i32, i32, i32
  }
  func.func @transform_1(%arg0: i32, %arg1: i32) -> (i32, i32, i32) {
    %c0_i32 = arith.constant 0 : i32
    %c0_i32_0 = arith.constant 0 : i32
    return %arg0, %c0_i32, %arg1 : i32, i32, i32
  }
  func.func @transform_2(%arg0: i32, %arg1: i32) -> (i32, i32) {
    %c0_i32 = arith.constant 0 : i32
    %c0_i32_0 = arith.constant 0 : i32
    %c0_i32_1 = arith.constant 0 : i32
    return %c0_i32, %c0_i32_0 : i32, i32
  }
  func.func @transform_3(%arg0: i32, %arg1: i32) -> (i32, i32) {
    %c0_i32 = arith.constant 0 : i32
    %c0_i32_0 = arith.constant 0 : i32
    %c0_i32_1 = arith.constant 0 : i32
    return %c0_i32, %c0_i32_0 : i32, i32
  }
  func.func @transform_4(%arg0: i32, %arg1: i32) -> (i32, i32, i32) {
    %c0_i32 = arith.constant 0 : i32
    %c0_i32_0 = arith.constant 0 : i32
    %c0_i32_1 = arith.constant 0 : i32
    return %arg0, %c0_i32, %c0_i32_0 : i32, i32, i32
  }
  func.func @transform_5(%arg0: i32, %arg1: i32) -> (i32, i32, i32) {
    %c0_i32 = arith.constant 0 : i32
    %c0_i32_0 = arith.constant 0 : i32
    %c0_i32_1 = arith.constant 0 : i32
    return %arg0, %c0_i32, %c0_i32_0 : i32, i32, i32
  }
}

</mosaic_0001>

<llo_original>
// kernel: tpu_custom_call.1
$region0: #{tpu_custom_call.1}
  #allocation0 [shape = 'u32[]', space=smem, size = 0x4, offset = 0x4, fixed_abs, tag = 'smem constant byte address 0x4 - core index']
  #allocation1 [shape = 'u32[144,128]{1,0:T(1,128)}', space=vmem, size = 0x12000, scoped, tag = 'internal scratch']
  #allocation2 [shape = 'f32[50,256]{1,0:T(8,128)}', space=vmem, size = 0xe000, scoped, tag = 'scratch operand']
  %s0 = inlined_call_operand.vmem [shape: bf16[2,4,256], index: 0, kind: input, shape index: {}]
  %s1 = inlined_call_operand.vmem [shape: bf16[2,4,256], index: 1, kind: input, shape index: {}]
  %s2 = inlined_call_operand.vmem [shape: bf16[50,4], index: 2, kind: input, shape index: {}]
  %s3 = inlined_call_operand.vmem [shape: bf16[4,4], index: 3, kind: input, shape index: {}]
  %s4 = inlined_call_operand.vmem [shape: f32[2,4,50], index: 4, kind: input, shape index: {}]
  %s5 = inlined_call_operand.hbm [shape: f32[2,4,256], index: 5, kind: output, shape index: {}]
  %s6 = sld [smem:[#allocation0]]
  $region61: #{tpu_custom_call.1} parent=0
    _
  %s8 = ssub.s32 1, %s6
  %s9 = scalar_select 0, %s8, %s6
  $region1: #{tpu_custom_call.1} parent=0
    #allocation3 [shape = 'u8[8192]{0}', space=vmem, size = 0x2000, scoped, tag = 'output window, operand 0']
    #allocation4 [shape = 's32[2]{0}', space=sflag, size = 0x8, scoped, tag = 'scoped memory for tpu_custom_call.1']
    %10 = vsyncpa [#allocation4], 0
    %s11 = scalar_lea.sflag [#allocation4], 1
    %12 = vsyncpa %s11, 0
    loop: start=0, step=1, limit=4
    $region2: #{tpu_custom_call.1} parent=1 // loop_pre_header
      _
    $region3: #{tpu_custom_call.1} parent=1 // loop_header
      %s14 = sphi 0, %s18
      %p15 = scmp.ge.s32.totalorder %s14, 4
      %s21 = sphi 0, %s33
      %s22 = sphi 0, %s29
      %s23 = sphi 0, %s21
      %s24 = sphi 0, %s22
      %s25 = sphi 0, %s23
      %s26 = sphi 0, %s24
      %s36 = sphi 0, %s38
      %s39 = sphi 0, %s36
      %s40 = sphi 0, %s39
      %s56 = sphi 0, %s40
      %s64 = sphi 0, %s66
      %s67 = sphi 0, %s64
      %s68 = sphi 0, %s67
      %s84 = sphi 0, %s68
      %s88 = sphi 0, %s88
      %s90 = sphi 0, %s88
      %s91 = sphi 0, %s90
      %s105 = sphi 0, %s91
      %s109 = sphi 0, %s109
      %s111 = sphi 0, %s109
      %s112 = sphi 0, %s111
      %s126 = sphi 0, %s112
      %s132 = sphi 0, %s134
      %s135 = sphi 0, %s132
      %s136 = sphi 0, %s135
      %s152 = sphi 0, %s136
      %s158 = sphi 0, %s160
      %s161 = sphi 0, %s158
      %s162 = sphi 0, %s161
      %s178 = sphi 0, %s162
    $region4: #{tpu_custom_call.1} parent=1 // loop_header_branch
      %17 = sbr.rel (%p15) target = $region8
    $region5: #{tpu_custom_call.1} parent=1 // loop_body
      %s19 = ssub.s32 %s14, 1
      %s20 = ssub.s32 %s14, 2
      %s27 = sadd.s32 1, %s22
      %p28 = scmp.ge.s32.totalorder %s27, 1
      %s29 = scalar_select %p28, 0, %s27
      %s30 = sadd.s32 1, %s21
      %s31 = scalar_select %p28, %s30, %s21
      %p32 = scmp.ge.s32.totalorder %s31, 2
      %s33 = scalar_select %p32, 0, %s31
      %s34 = ssub.s32 %s21, %s33
      %p35 = scmp.eq.s32.totalorder %s34, 0
      %s37 = sadd.s32 %s36, 1
      %s38 = scalar_select %p35, %s36, %s37
      %p41 = pneg %p35
      %p42 = scmp.eq.s32.totalorder %s14, 1
      %p43 = por %p41, %p42
      %p44 = scmp.ne.s32.totalorder %s36, %s39
      %p45 = scmp.eq.s32.totalorder %s14, 0
      %p46 = por %p44, %p45
      %p47 = scmp.ne.s32.totalorder %s36, %s39
      %p48 = scmp.eq.s32.totalorder %s19, 1
      %p49 = por %p47, %p48
      %p50 = scmp.ne.s32.totalorder %s39, %s40
      %p51 = scmp.eq.s32.totalorder %s19, 0
      %p52 = por %p50, %p51
      %p53 = scmp.ne.s32.totalorder %s39, %s40
      %p54 = scmp.eq.s32.totalorder %s20, 1
      %p55 = por %p53, %p54
      %p57 = scmp.ne.s32.totalorder %s40, %s56
      %p58 = scmp.eq.s32.totalorder %s20, 0
      %p59 = por %p57, %p58
      %s60 = ssub.s32 %s21, %s33
      %s61 = ssub.s32 %s22, %s29
      %s62 = sor.u32 %s60, %s61
      %p63 = scmp.eq.s32.totalorder %s62, 0
      %s65 = sadd.s32 %s64, 1
      %s66 = scalar_select %p63, %s64, %s65
      %p69 = pneg %p63
      %p70 = scmp.eq.s32.totalorder %s14, 1
      %p71 = por %p69, %p70
      %p72 = scmp.ne.s32.totalorder %s64, %s67
      %p73 = scmp.eq.s32.totalorder %s14, 0
      %p74 = por %p72, %p73
      %p75 = scmp.ne.s32.totalorder %s64, %s67
      %p76 = scmp.eq.s32.totalorder %s19, 1
      %p77 = por %p75, %p76
      %p78 = scmp.ne.s32.totalorder %s67, %s68
      %p79 = scmp.eq.s32.totalorder %s19, 0
      %p80 = por %p78, %p79
      %p81 = scmp.ne.s32.totalorder %s67, %s68
      %p82 = scmp.eq.s32.totalorder %s20, 1
      %p83 = por %p81, %p82
      %p85 = scmp.ne.s32.totalorder %s68, %s84
      %p86 = scmp.eq.s32.totalorder %s20, 0
      %p87 = por %p85, %p86
      %s89 = sadd.s32 %s88, 1
      %p92 = scmp.eq.s32.totalorder %s14, 1
      %p93 = scmp.ne.s32.totalorder %s88, %s90
      %p94 = scmp.eq.s32.totalorder %s14, 0
      %p95 = por %p93, %p94
      %p96 = scmp.ne.s32.totalorder %s88, %s90
      %p97 = scmp.eq.s32.totalorder %s19, 1
      %p98 = por %p96, %p97
      %p99 = scmp.ne.s32.totalorder %s90, %s91
      %p100 = scmp.eq.s32.totalorder %s19, 0
      %p101 = por %p99, %p100
      %p102 = scmp.ne.s32.totalorder %s90, %s91
      %p103 = scmp.eq.s32.totalorder %s20, 1
      %p104 = por %p102, %p103
      %p106 = scmp.ne.s32.totalorder %s91, %s105
      %p107 = scmp.eq.s32.totalorder %s20, 0
      %p108 = por %p106, %p107
      %s110 = sadd.s32 %s109, 1
      %p113 = scmp.eq.s32.totalorder %s14, 1
      %p114 = scmp.ne.s32.totalorder %s109, %s111
      %p115 = scmp.eq.s32.totalorder %s14, 0
      %p116 = por %p114, %p115
      %p117 = scmp.ne.s32.totalorder %s109, %s111
      %p118 = scmp.eq.s32.totalorder %s19, 1
      %p119 = por %p117, %p118
      %p120 = scmp.ne.s32.totalorder %s111, %s112
      %p121 = scmp.eq.s32.totalorder %s19, 0
      %p122 = por %p120, %p121
      %p123 = scmp.ne.s32.totalorder %s111, %s112
      %p124 = scmp.eq.s32.totalorder %s20, 1
      %p125 = por %p123, %p124
      %p127 = scmp.ne.s32.totalorder %s112, %s126
      %p128 = scmp.eq.s32.totalorder %s20, 0
      %p129 = por %p127, %p128
      %s130 = ssub.s32 %s21, %s33
      %p131 = scmp.eq.s32.totalorder %s130, 0
      %s133 = sadd.s32 %s132, 1
      %s134 = scalar_select %p131, %s132, %s133
      %p137 = pneg %p131
      %p138 = scmp.eq.s32.totalorder %s14, 1
      %p139 = por %p137, %p138
      %p140 = scmp.ne.s32.totalorder %s132, %s135
      %p141 = scmp.eq.s32.totalorder %s14, 0
      %p142 = por %p140, %p141
      %p143 = scmp.ne.s32.totalorder %s132, %s135
      %p144 = scmp.eq.s32.totalorder %s19, 1
      %p145 = por %p143, %p144
      %p146 = scmp.ne.s32.totalorder %s135, %s136
      %p147 = scmp.eq.s32.totalorder %s19, 0
      %p148 = por %p146, %p147
      %p149 = scmp.ne.s32.totalorder %s135, %s136
      %p150 = scmp.eq.s32.totalorder %s20, 1
      %p151 = por %p149, %p150
      %p153 = scmp.ne.s32.totalorder %s136, %s152
      %p154 = scmp.eq.s32.totalorder %s20, 0
      %p155 = por %p153, %p154
      %s156 = ssub.s32 %s21, %s33
      %p157 = scmp.eq.s32.totalorder %s156, 0
      %s159 = sadd.s32 %s158, 1
      %s160 = scalar_select %p157, %s158, %s159
      %p163 = pneg %p157
      %p164 = scmp.eq.s32.totalorder %s14, 1
      %p165 = por %p163, %p164
      %p166 = scmp.ne.s32.totalorder %s158, %s161
      %p167 = scmp.eq.s32.totalorder %s14, 0
      %p168 = por %p166, %p167
      %p169 = scmp.ne.s32.totalorder %s158, %s161
      %p170 = scmp.eq.s32.totalorder %s19, 1
      %p171 = por %p169, %p170
      %p172 = scmp.ne.s32.totalorder %s161, %s162
      %p173 = scmp.eq.s32.totalorder %s19, 0
      %p174 = por %p172, %p173
      %p175 = scmp.ne.s32.totalorder %s161, %s162
      %p176 = scmp.eq.s32.totalorder %s20, 1
      %p177 = por %p175, %p176
      %p179 = scmp.ne.s32.totalorder %s162, %s178
      %p180 = scmp.eq.s32.totalorder %s20, 0
      %p181 = por %p179, %p180
      %p182 = scmp.le.s32.totalorder 1, %s14
      %p183 = scmp.lt.s32.totalorder %s14, 3
      %p184 = pnand %p182, %p183
      %p185 = pneg %p184
      // Predicated region
      $region9: #{tpu_custom_call.1} parent=5 // pred_check
        _
      $region10: #{tpu_custom_call.1} parent=5 // pred_check_branch
        %187 = sbr.rel (%p184) target = $region12
      $region11: #{tpu_custom_call.1} parent=5 // pred_region
        %s188 = ssub.s32 %s14, 1
        // Predicated region
        $region13: #{tpu_custom_call.1} parent=11 // pred_check
          %p189 = pneg %p101
        $region14: #{tpu_custom_call.1} parent=11 // pred_check_branch
          %191 = sbr.rel (%p189) target = $region16
        $region15: #{tpu_custom_call.1} parent=11 // pred_region
          _
        $region16: #{tpu_custom_call.1} parent=11 // pred_fallthru
          _
        // Predicated region
        $region17: #{tpu_custom_call.1} parent=11 // pred_check
          %p192 = pneg %p122
        $region18: #{tpu_custom_call.1} parent=11 // pred_check_branch
          %194 = sbr.rel (%p192) target = $region20
        $region19: #{tpu_custom_call.1} parent=11 // pred_region
          _
        $region20: #{tpu_custom_call.1} parent=11 // pred_fallthru
          _
      $region12: #{tpu_custom_call.1} parent=5 // pred_fallthru
        _
      %p195 = scmp.lt.s32.totalorder %s14, 2
      // Predicated region
      $region21: #{tpu_custom_call.1} parent=5 // pred_check
        %p196 = pneg %p195
      $region22: #{tpu_custom_call.1} parent=5 // pred_check_branch
        %198 = sbr.rel (%p196) target = $region24
      $region23: #{tpu_custom_call.1} parent=5 // pred_region
        // Predicated region
        $region25: #{tpu_custom_call.1} parent=23 // pred_check
          %p199 = pneg %p46
        $region26: #{tpu_custom_call.1} parent=23 // pred_check_branch
          %201 = sbr.rel (%p199) target = $region28
        $region27: #{tpu_custom_call.1} parent=23 // pred_region
          %p202 = scmp.lt.s32.totalorder %s21, 1
          %s203 = scalar_select %p202, %s21, 1
          %s204 = smul.addr %s203, 2
          %s205 = smul.addr %s204, 2
          %s206 = scalar_lea.vmem %s0, %s205
        $region28: #{tpu_custom_call.1} parent=23 // pred_fallthru
          _
        // Predicated region
        $region29: #{tpu_custom_call.1} parent=23 // pred_check
          %p207 = pneg %p74
        $region30: #{tpu_custom_call.1} parent=23 // pred_check_branch
          %209 = sbr.rel (%p207) target = $region32
        $region31: #{tpu_custom_call.1} parent=23 // pred_region
          %s210 = smul.u32 2, %s22
          %p211 = scmp.lt.s32.totalorder %s21, 1
          %s212 = scalar_select %p211, %s21, 1
          %p213 = scmp.lt.s32.totalorder %s210, 1
          %s214 = scalar_select %p213, %s210, 1
          %s215 = smul.addr %s212, 2
          %s216 = sadd.s32 %s214, %s215
          %s217 = smul.addr %s216, 2
          %s218 = scalar_lea.vmem %s1, %s217
          %s219 = smul.u32 2, %s22
        $region32: #{tpu_custom_call.1} parent=23 // pred_fallthru
          _
        // Predicated region
        $region33: #{tpu_custom_call.1} parent=23 // pred_check
          %p220 = pneg %p142
        $region34: #{tpu_custom_call.1} parent=23 // pred_check_branch
          %222 = sbr.rel (%p220) target = $region36
        $region35: #{tpu_custom_call.1} parent=23 // pred_region
          %p223 = scmp.lt.s32.totalorder %s21, 1
          %s224 = scalar_select %p223, %s21, 1
          %s225 = smul.addr %s224, 4
          %s226 = scalar_lea.vmem %s4, %s225
        $region36: #{tpu_custom_call.1} parent=23 // pred_fallthru
          _
      $region24: #{tpu_custom_call.1} parent=5 // pred_fallthru
        _
      %p227 = scmp.le.s32.totalorder 1, %s14
      %p228 = scmp.lt.s32.totalorder %s14, 3
      %p229 = pnand %p227, %p228
      %p230 = pneg %p229
      // Predicated region
      $region37: #{tpu_custom_call.1} parent=5 // pred_check
        _
      $region38: #{tpu_custom_call.1} parent=5 // pred_check_branch
        %232 = sbr.rel (%p229) target = $region40
      $region39: #{tpu_custom_call.1} parent=5 // pred_region
        %s233 = ssub.s32 %s14, 1
        %p234 = scmp.lt.s32.totalorder %s23, 1
        %s235 = scalar_select %p234, %s23, 1
        %s236 = smul.addr %s235, 2
        %s237 = smul.addr %s236, 2
        %s238 = scalar_lea.vmem %s0, %s237
        %p239 = pneg %p52
        %p240 = pneg %p49
        %s241 = smul.u32 2, %s24
        %p242 = scmp.lt.s32.totalorder %s23, 1
        %s243 = scalar_select %p242, %s23, 1
        %p244 = scmp.lt.s32.totalorder %s241, 1
        %s245 = scalar_select %p244, %s241, 1
        %s246 = smul.addr %s243, 2
        %s247 = sadd.s32 %s245, %s246
        %s248 = smul.addr %s247, 2
        %s249 = scalar_lea.vmem %s1, %s248
        %p250 = pneg %p80
        %p251 = pneg %p77
        %p252 = pneg %p101
        %p253 = pneg %p98
        %p254 = pneg %p122
        %p255 = pneg %p119
        %p256 = scmp.lt.s32.totalorder %s23, 1
        %s257 = scalar_select %p256, %s23, 1
        %s258 = smul.addr %s257, 4
        %s259 = scalar_lea.vmem %s4, %s258
        %p260 = pneg %p148
        %p261 = pneg %p145
        %p262 = pneg %p174
        %p263 = pneg %p171
        %s264 = sand.u32 %s161, 1
        %s265 = scalar_lea.sflag [#allocation4], %s264
        %s266 = sand.u32 %s161, 1
        %s267 = smul.addr %s266, 8
        %s268 = scalar_lea.vmem [#allocation3], %s267
        %p269 = scmp.lt.s32.totalorder %s23, 1
        %s270 = scalar_select %p269, %s23, 1
        %s271 = smul.addr %s270, 2
        %s272 = smul.addr %s271, 2
        %s273 = scalar_lea.vmem %s0, %s272
        %s274 = smul.u32 2, %s24
        %p275 = scmp.lt.s32.totalorder %s23, 1
        %s276 = scalar_select %p275, %s23, 1
        %p277 = scmp.lt.s32.totalorder %s274, 1
        %s278 = scalar_select %p277, %s274, 1
        %s279 = smul.addr %s276, 2
        %s280 = sadd.s32 %s278, %s279
        %s281 = smul.addr %s280, 2
        %s282 = scalar_lea.vmem %s1, %s281
        %s283 = smul.u32 2, %s24
        %p284 = scmp.lt.s32.totalorder %s23, 1
        %s285 = scalar_select %p284, %s23, 1
        %s286 = smul.addr %s285, 4
        %s287 = scalar_lea.vmem %s4, %s286
        %p289 = scmp.eq.s32.totalorder %s24, 0
        // Predicated region
        $region41: #{tpu_custom_call.1} parent=39 // pred_check
          %p290 = pneg %p289
        $region42: #{tpu_custom_call.1} parent=39 // pred_check_branch
          %292 = sbr.rel (%p290) target = $region44
        $region43: #{tpu_custom_call.1} parent=39 // pred_region
          %293 = vst [vmem:[#allocation2] sm:$0xff] 0.0
          %294 = vst [vmem:[#allocation2 + $0x8] sm:$0xff] 0.0
          %295 = vst [vmem:[#allocation2 + $0x10] sm:$0xff] 0.0
          %296 = vst [vmem:[#allocation2 + $0x18] sm:$0xff] 0.0
          %297 = vst [vmem:[#allocation2 + $0x20] sm:$0xff] 0.0
          %298 = vst [vmem:[#allocation2 + $0x28] sm:$0xff] 0.0
          %299 = vst [vmem:[#allocation2 + $0x30] sm:$0xff] 0.0
          %300 = vst [vmem:[#allocation2 + $0x38] sm:$0xff] 0.0
          %301 = vst [vmem:[#allocation2 + $0x40] sm:$0xff] 0.0
          %302 = vst [vmem:[#allocation2 + $0x48] sm:$0xff] 0.0
          %303 = vst [vmem:[#allocation2 + $0x50] sm:$0xff] 0.0
          %304 = vst [vmem:[#allocation2 + $0x58] sm:$0xff] 0.0
          %305 = vst [vmem:[#allocation2 + $0x60] sm:$0x3] 0.0
          %306 = vst [vmem:[#allocation2 + $0x68] sm:$0x3] 0.0
        $region44: #{tpu_custom_call.1} parent=39 // pred_fallthru
          _
        %v307 = vld [vmem:[%s273] sm:$0xf]
        %v308 = vld [vmem:[%s282] sm:$0xf]
        %v311 = vunpack.c.l.s4 1983009808
        %v312 = vunpack.c.0.s8 %v311
        %v313 = vlaneseq
        %v314 = vshrl.u32 %v313, 7
        %v315 = vsub.s32 %v312, %v314
        %v316 = vrot.slane %v308, %v315
        %v317 = vcombine.high %v316, %v316
        %320 = vxpose.xlu0.c.b16.start [1/8] %v316, 128
        %321 = vxpose.xlu0.c.b16.cont [2/8] 0, 128
        %322 = vxpose.xlu0.c.b16.cont [3/8] 0, 128
        %323 = vxpose.xlu0.c.b16.cont [4/8] 0, 128
        %324 = vxpose.xlu0.c.b16.cont [5/8] 0, 128
        %325 = vxpose.xlu0.c.b16.cont [6/8] 0, 128
        %326 = vxpose.xlu0.c.b16.cont [7/8] 0, 128
        %327 = vxpose.xlu0.c.b16.end [8/8] 0, 128
        %v328 = vpop.trf.xlu0
        %v329 = vpop.trf.xlu0
        %v330 = vpop.trf.xlu0
        %v331 = vpop.trf.xlu0
        %v332 = vpop.trf.xlu0
        %v333 = vpop.trf.xlu0
        %v334 = vpop.trf.xlu0
        %v335 = vpop.trf.xlu0
        %336 = vxpose.xlu0.c.b16.start [1/8] %v317, 128
        %337 = vxpose.xlu0.c.b16.cont [2/8] 0, 128
        %338 = vxpose.xlu0.c.b16.cont [3/8] 0, 128
        %339 = vxpose.xlu0.c.b16.cont [4/8] 0, 128
        %340 = vxpose.xlu0.c.b16.cont [5/8] 0, 128
        %341 = vxpose.xlu0.c.b16.cont [6/8] 0, 128
        %342 = vxpose.xlu0.c.b16.cont [7/8] 0, 128
        %343 = vxpose.xlu0.c.b16.end [8/8] 0, 128
        %v344 = vpop.trf.xlu0
        %v345 = vpop.trf.xlu0
        %v346 = vpop.trf.xlu0
        %v347 = vpop.trf.xlu0
        %v348 = vpop.trf.xlu0
        %v349 = vpop.trf.xlu0
        %v350 = vpop.trf.xlu0
        %v351 = vpop.trf.xlu0
        %v354 = vunpack.c.l.s4 1983009808
        %v355 = vunpack.c.0.s8 %v354
        %v356 = vlaneseq
        %v357 = vshrl.u32 %v356, 7
        %v358 = vsub.s32 %v355, %v357
        %v359 = vrot.slane %v307, %v358
        %v360 = vcombine.high %v359, %v359
        %vm361 = vcmask 31744
        %v363 = vsel %vm361, %v328, 0
        %v366 = vsel %vm361, %v329, 0
        %v369 = vsel %vm361, %v330, 0
        %v372 = vsel %vm361, %v331, 0
        %v375 = vsel %vm361, %v332, 0
        %v378 = vsel %vm361, %v333, 0
        %v381 = vsel %vm361, %v334, 0
        %v384 = vsel %vm361, %v335, 0
        %v387 = vsel %vm361, %v344, 0
        %v390 = vsel %vm361, %v345, 0
        %v393 = vsel %vm361, %v346, 0
        %v396 = vsel %vm361, %v347, 0
        %v399 = vsel %vm361, %v348, 0
        %v402 = vsel %vm361, %v349, 0
        %v405 = vsel %vm361, %v350, 0
        %v408 = vsel %vm361, %v351, 0
        %vm410 = vcmask 1041408
        %v412 = vsel %vm410, %v359, 0
        %v415 = vsel %vm410, %v360, 0
        %417 = vmatprep.subr.bf16.mxu0 0
        %418 = vmatpush1.bf16.msra.mxu0 0
        %419 = vmatprep.subr.bf16.mxu0 0
        %420 = vmatpush1.bf16.msra.mxu0 0
        %421 = vmatprep.subr.bf16.mxu0 0
        %422 = vmatpush1.bf16.msra.mxu0 0
        %423 = vmatprep.subr.bf16.mxu0 0
        %424 = vmatpush1.bf16.msra.mxu0 0
        %425 = vmatprep.subr.bf16.mxu0 0
        %426 = vmatpush1.bf16.msra.mxu0 0
        %427 = vmatprep.subr.bf16.mxu0 0
        %428 = vmatpush1.bf16.msra.mxu0 0
        %429 = vmatprep.subr.bf16.mxu0 0
        %430 = vmatpush1.bf16.msra.mxu0 0
        %431 = vmatprep.subr.bf16.mxu0 %v415
        %432 = vmatpush1.bf16.msra.mxu0 %v412
        %433 = vmatprep.subr.bf16.mxu0 0
        %434 = vmatpush2.bf16.msra.mxu0 0
        %435 = vmatprep.subr.bf16.mxu0 0
        %436 = vmatpush2.bf16.msra.mxu0 0
        %437 = vmatprep.subr.bf16.mxu0 0
        %438 = vmatpush2.bf16.msra.mxu0 0
        %439 = vmatprep.subr.bf16.mxu0 0
        %440 = vmatpush2.bf16.msra.mxu0 0
        %441 = vmatprep.subr.bf16.mxu0 0
        %442 = vmatpush2.bf16.msra.mxu0 0
        %443 = vmatprep.subr.bf16.mxu0 0
        %444 = vmatpush2.bf16.msra.mxu0 0
        %445 = vmatprep.subr.bf16.mxu0 0
        %446 = vmatpush2.bf16.msra.mxu0 0
        %447 = vmatprep.subr.bf16.mxu0 0
        %448 = vmatpush2.bf16.msra.mxu0 0
        %449 = vmatprep.mubr.bf16.mxu0 0
        %450 = vmatmul.mubr.bf16.gmra.mxu0 %v363
        %v451 = vpop.f32.mrf.mxu0
        %v452 = vadd.f32 0.0, %v451
        %v453 = vpop.f32.mrf.mxu0
        %v454 = vadd.f32 0.0, %v453
        %v455 = vpop.f32.mrf.mxu0
        %v456 = vadd.f32 0.0, %v455
        %v457 = vpop.f32.mrf.mxu0
        %v458 = vadd.f32 0.0, %v457
        %459 = vmatprep.mubr.bf16.mxu0 0
        %460 = vmatmul.mubr.bf16.gmra.mxu0 %v366
        %v461 = vpop.f32.mrf.mxu0
        %v462 = vadd.f32 0.0, %v461
        %v463 = vpop.f32.mrf.mxu0
        %v464 = vadd.f32 0.0, %v463
        %v465 = vpop.f32.mrf.mxu0
        %v466 = vadd.f32 0.0, %v465
        %v467 = vpop.f32.mrf.mxu0
        %v468 = vadd.f32 0.0, %v467
        %469 = vmatprep.mubr.bf16.mxu0 0
        %470 = vmatmul.mubr.bf16.gmra.mxu0 %v369
        %v471 = vpop.f32.mrf.mxu0
        %v472 = vadd.f32 0.0, %v471
        %v473 = vpop.f32.mrf.mxu0
        %v474 = vadd.f32 0.0, %v473
        %v475 = vpop.f32.mrf.mxu0
        %v476 = vadd.f32 0.0, %v475
        %v477 = vpop.f32.mrf.mxu0
        %v478 = vadd.f32 0.0, %v477
        %479 = vmatprep.mubr.bf16.mxu0 0
        %480 = vmatmul.mubr.bf16.gmra.mxu0 %v372
        %v481 = vpop.f32.mrf.mxu0
        %v482 = vadd.f32 0.0, %v481
        %v483 = vpop.f32.mrf.mxu0
        %v484 = vadd.f32 0.0, %v483
        %v485 = vpop.f32.mrf.mxu0
        %v486 = vadd.f32 0.0, %v485
        %v487 = vpop.f32.mrf.mxu0
        %v488 = vadd.f32 0.0, %v487
        %489 = vmatprep.mubr.bf16.mxu0 0
        %490 = vmatmul.mubr.bf16.gmra.mxu0 %v375
        %v491 = vpop.f32.mrf.mxu0
        %v492 = vadd.f32 0.0, %v491
        %v493 = vpop.f32.mrf.mxu0
        %v494 = vadd.f32 0.0, %v493
        %v495 = vpop.f32.mrf.mxu0
        %v496 = vadd.f32 0.0, %v495
        %v497 = vpop.f32.mrf.mxu0
        %v498 = vadd.f32 0.0, %v497
        %499 = vmatprep.mubr.bf16.mxu0 0
        %500 = vmatmul.mubr.bf16.gmra.mxu0 %v378
        %v501 = vpop.f32.mrf.mxu0
        %v502 = vadd.f32 0.0, %v501
        %v503 = vpop.f32.mrf.mxu0
        %v504 = vadd.f32 0.0, %v503
        %v505 = vpop.f32.mrf.mxu0
        %v506 = vadd.f32 0.0, %v505
        %v507 = vpop.f32.mrf.mxu0
        %v508 = vadd.f32 0.0, %v507
        %509 = vmatprep.mubr.bf16.mxu0 0
        %510 = vmatmul.mubr.bf16.gmra.mxu0 %v381
        %v511 = vpop.f32.mrf.mxu0
        %v512 = vadd.f32 0.0, %v511
        %v513 = vpop.f32.mrf.mxu0
        %v514 = vadd.f32 0.0, %v513
        %v515 = vpop.f32.mrf.mxu0
        %v516 = vadd.f32 0.0, %v515
        %v517 = vpop.f32.mrf.mxu0
        %v518 = vadd.f32 0.0, %v517
        %519 = vmatprep.mubr.bf16.mxu0 0
        %520 = vmatmul.mubr.bf16.gmra.mxu0 %v384
        %v521 = vpop.f32.mrf.mxu0
        %v522 = vadd.f32 0.0, %v521
        %v523 = vpop.f32.mrf.mxu0
        %v524 = vadd.f32 0.0, %v523
        %v525 = vpop.f32.mrf.mxu0
        %v526 = vadd.f32 0.0, %v525
        %v527 = vpop.f32.mrf.mxu0
        %v528 = vadd.f32 0.0, %v527
        %529 = vmatprep.mubr.bf16.mxu0 0
        %530 = vmatmul.mubr.bf16.gmra.mxu0 %v387
        %v531 = vpop.f32.mrf.mxu0
        %v532 = vadd.f32 0.0, %v531
        %v533 = vpop.f32.mrf.mxu0
        %v534 = vadd.f32 0.0, %v533
        %v535 = vpop.f32.mrf.mxu0
        %v536 = vadd.f32 0.0, %v535
        %v537 = vpop.f32.mrf.mxu0
        %v538 = vadd.f32 0.0, %v537
        %539 = vmatprep.mubr.bf16.mxu0 0
        %540 = vmatmul.mubr.bf16.gmra.mxu0 %v390
        %v541 = vpop.f32.mrf.mxu0
        %v542 = vadd.f32 0.0, %v541
        %v543 = vpop.f32.mrf.mxu0
        %v544 = vadd.f32 0.0, %v543
        %v545 = vpop.f32.mrf.mxu0
        %v546 = vadd.f32 0.0, %v545
        %v547 = vpop.f32.mrf.mxu0
        %v548 = vadd.f32 0.0, %v547
        %549 = vmatprep.mubr.bf16.mxu0 0
        %550 = vmatmul.mubr.bf16.gmra.mxu0 %v393
        %v551 = vpop.f32.mrf.mxu0
        %v552 = vadd.f32 0.0, %v551
        %v553 = vpop.f32.mrf.mxu0
        %v554 = vadd.f32 0.0, %v553
        %v555 = vpop.f32.mrf.mxu0
        %v556 = vadd.f32 0.0, %v555
        %v557 = vpop.f32.mrf.mxu0
        %v558 = vadd.f32 0.0, %v557
        %559 = vmatprep.mubr.bf16.mxu0 0
        %560 = vmatmul.mubr.bf16.gmra.mxu0 %v396
        %v561 = vpop.f32.mrf.mxu0
        %v562 = vadd.f32 0.0, %v561
        %v563 = vpop.f32.mrf.mxu0
        %v564 = vadd.f32 0.0, %v563
        %v565 = vpop.f32.mrf.mxu0
        %v566 = vadd.f32 0.0, %v565
        %v567 = vpop.f32.mrf.mxu0
        %v568 = vadd.f32 0.0, %v567
        %569 = vmatprep.mubr.bf16.mxu0 0
        %570 = vmatmul.mubr.bf16.gmra.mxu0 %v399
        %v571 = vpop.f32.mrf.mxu0
        %v572 = vadd.f32 0.0, %v571
        %v573 = vpop.f32.mrf.mxu0
        %v574 = vadd.f32 0.0, %v573
        %v575 = vpop.f32.mrf.mxu0
        %v576 = vadd.f32 0.0, %v575
        %v577 = vpop.f32.mrf.mxu0
        %v578 = vadd.f32 0.0, %v577
        %579 = vmatprep.mubr.bf16.mxu0 0
        %580 = vmatmul.mubr.bf16.gmra.mxu0 %v402
        %v581 = vpop.f32.mrf.mxu0
        %v582 = vadd.f32 0.0, %v581
        %v583 = vpop.f32.mrf.mxu0
        %v584 = vadd.f32 0.0, %v583
        %v585 = vpop.f32.mrf.mxu0
        %v586 = vadd.f32 0.0, %v585
        %v587 = vpop.f32.mrf.mxu0
        %v588 = vadd.f32 0.0, %v587
        %589 = vmatprep.mubr.bf16.mxu0 0
        %590 = vmatmul.mubr.bf16.gmra.mxu0 %v405
        %v591 = vpop.f32.mrf.mxu0
        %v592 = vadd.f32 0.0, %v591
        %v593 = vpop.f32.mrf.mxu0
        %v594 = vadd.f32 0.0, %v593
        %v595 = vpop.f32.mrf.mxu0
        %v596 = vadd.f32 0.0, %v595
        %v597 = vpop.f32.mrf.mxu0
        %v598 = vadd.f32 0.0, %v597
        %599 = vmatprep.mubr.bf16.mxu0 0
        %600 = vmatmul.mubr.bf16.gmra.mxu0 %v408
        %v601 = vpop.f32.mrf.mxu0
        %v602 = vadd.f32 0.0, %v601
        %v603 = vpop.f32.mrf.mxu0
        %v604 = vadd.f32 0.0, %v603
        %v605 = vpop.f32.mrf.mxu0
        %v606 = vadd.f32 0.0, %v605
        %v607 = vpop.f32.mrf.mxu0
        %v608 = vadd.f32 0.0, %v607
        %609 = vdwg.mxu0
        %v610 = vmax.f32 %v452, %v454
        %611 = vmax.xlane.f32.xlu0 %v610
        %v612 = vpop.xlane.xlu0 %611
        %v613 = vmax.f32 %v456, %v458
        %614 = vmax.xlane.f32.xlu0 %v613
        %v615 = vpop.xlane.xlu0 %614
        %v616 = vmax.f32 %v462, %v464
        %617 = vmax.xlane.f32.xlu0 %v616
        %v618 = vpop.xlane.xlu0 %617
        %v619 = vmax.f32 %v466, %v468
        %620 = vmax.xlane.f32.xlu0 %v619
        %v621 = vpop.xlane.xlu0 %620
        %v622 = vmax.f32 %v472, %v474
        %623 = vmax.xlane.f32.xlu0 %v622
        %v624 = vpop.xlane.xlu0 %623
        %v625 = vmax.f32 %v476, %v478
        %626 = vmax.xlane.f32.xlu0 %v625
        %v627 = vpop.xlane.xlu0 %626
        %v628 = vmax.f32 %v482, %v484
        %629 = vmax.xlane.f32.xlu0 %v628
        %v630 = vpop.xlane.xlu0 %629
        %v631 = vmax.f32 %v486, %v488
        %632 = vmax.xlane.f32.xlu0 %v631
        %v633 = vpop.xlane.xlu0 %632
        %v634 = vmax.f32 %v492, %v494
        %635 = vmax.xlane.f32.xlu0 %v634
        %v636 = vpop.xlane.xlu0 %635
        %v637 = vmax.f32 %v496, %v498
        %638 = vmax.xlane.f32.xlu0 %v637
        %v639 = vpop.xlane.xlu0 %638
        %v640 = vmax.f32 %v502, %v504
        %641 = vmax.xlane.f32.xlu0 %v640
        %v642 = vpop.xlane.xlu0 %641
        %v643 = vmax.f32 %v506, %v508
        %644 = vmax.xlane.f32.xlu0 %v643
        %v645 = vpop.xlane.xlu0 %644
        %v646 = vmax.f32 %v512, %v514
        %647 = vmax.xlane.f32.xlu0 %v646
        %v648 = vpop.xlane.xlu0 %647
        %v649 = vmax.f32 %v516, %v518
        %650 = vmax.xlane.f32.xlu0 %v649
        %v651 = vpop.xlane.xlu0 %650
        %v652 = vmax.f32 %v522, %v524
        %653 = vmax.xlane.f32.xlu0 %v652
        %v654 = vpop.xlane.xlu0 %653
        %v655 = vmax.f32 %v526, %v528
        %656 = vmax.xlane.f32.xlu0 %v655
        %v657 = vpop.xlane.xlu0 %656
        %v658 = vmax.f32 %v532, %v534
        %659 = vmax.xlane.f32.xlu0 %v658
        %v660 = vpop.xlane.xlu0 %659
        %v661 = vmax.f32 %v536, %v538
        %662 = vmax.xlane.f32.xlu0 %v661
        %v663 = vpop.xlane.xlu0 %662
        %v664 = vmax.f32 %v542, %v544
        %665 = vmax.xlane.f32.xlu0 %v664
        %v666 = vpop.xlane.xlu0 %665
        %v667 = vmax.f32 %v546, %v548
        %668 = vmax.xlane.f32.xlu0 %v667
        %v669 = vpop.xlane.xlu0 %668
        %v670 = vmax.f32 %v552, %v554
        %671 = vmax.xlane.f32.xlu0 %v670
        %v672 = vpop.xlane.xlu0 %671
        %v673 = vmax.f32 %v556, %v558
        %674 = vmax.xlane.f32.xlu0 %v673
        %v675 = vpop.xlane.xlu0 %674
        %v676 = vmax.f32 %v562, %v564
        %677 = vmax.xlane.f32.xlu0 %v676
        %v678 = vpop.xlane.xlu0 %677
        %v679 = vmax.f32 %v566, %v568
        %680 = vmax.xlane.f32.xlu0 %v679
        %v681 = vpop.xlane.xlu0 %680
        %v682 = vmax.f32 %v572, %v574
        %683 = vmax.xlane.f32.xlu0 %v682
        %v684 = vpop.xlane.xlu0 %683
        %v685 = vmax.f32 %v576, %v578
        %686 = vmax.xlane.f32.xlu0 %v685
        %v687 = vpop.xlane.xlu0 %686
        %v688 = vmax.f32 %v582, %v584
        %689 = vmax.xlane.f32.xlu0 %v688
        %v690 = vpop.xlane.xlu0 %689
        %v691 = vmax.f32 %v586, %v588
        %692 = vmax.xlane.f32.xlu0 %v691
        %v693 = vpop.xlane.xlu0 %692
        %v694 = vmax.f32 %v592, %v594
        %695 = vmax.xlane.f32.xlu0 %v694
        %v696 = vpop.xlane.xlu0 %695
        %v697 = vmax.f32 %v596, %v598
        %698 = vmax.xlane.f32.xlu0 %v697
        %v699 = vpop.xlane.xlu0 %698
        %v700 = vmax.f32 %v602, %v604
        %701 = vmax.xlane.f32.xlu0 %v700
        %v702 = vpop.xlane.xlu0 %701
        %v703 = vmax.f32 %v606, %v608
        %704 = vmax.xlane.f32.xlu0 %v703
        %v705 = vpop.xlane.xlu0 %704
        %v706 = vsub.f32 %v452, %v612
        %v707 = vsub.f32 %v454, %v612
        %v708 = vsub.f32 %v456, %v615
        %v709 = vsub.f32 %v458, %v615
        %v710 = vsub.f32 %v462, %v618
        %v711 = vsub.f32 %v464, %v618
        %v712 = vsub.f32 %v466, %v621
        %v713 = vsub.f32 %v468, %v621
        %v714 = vsub.f32 %v472, %v624
        %v715 = vsub.f32 %v474, %v624
        %v716 = vsub.f32 %v476, %v627
        %v717 = vsub.f32 %v478, %v627
        %v718 = vsub.f32 %v482, %v630
        %v719 = vsub.f32 %v484, %v630
        %v720 = vsub.f32 %v486, %v633
        %v721 = vsub.f32 %v488, %v633
        %v722 = vsub.f32 %v492, %v636
        %v723 = vsub.f32 %v494, %v636
        %v724 = vsub.f32 %v496, %v639
        %v725 = vsub.f32 %v498, %v639
        %v726 = vsub.f32 %v502, %v642
        %v727 = vsub.f32 %v504, %v642
        %v728 = vsub.f32 %v506, %v645
        %v729 = vsub.f32 %v508, %v645
        %v730 = vsub.f32 %v512, %v648
        %v731 = vsub.f32 %v514, %v648
        %v732 = vsub.f32 %v516, %v651
        %v733 = vsub.f32 %v518, %v651
        %v734 = vsub.f32 %v522, %v654
        %v735 = vsub.f32 %v524, %v654
        %v736 = vsub.f32 %v526, %v657
        %v737 = vsub.f32 %v528, %v657
        %v738 = vsub.f32 %v532, %v660
        %v739 = vsub.f32 %v534, %v660
        %v740 = vsub.f32 %v536, %v663
        %v741 = vsub.f32 %v538, %v663
        %v742 = vsub.f32 %v542, %v666
        %v743 = vsub.f32 %v544, %v666
        %v744 = vsub.f32 %v546, %v669
        %v745 = vsub.f32 %v548, %v669
        %v746 = vsub.f32 %v552, %v672
        %v747 = vsub.f32 %v554, %v672
        %v748 = vsub.f32 %v556, %v675
        %v749 = vsub.f32 %v558, %v675
        %v750 = vsub.f32 %v562, %v678
        %v751 = vsub.f32 %v564, %v678
        %v752 = vsub.f32 %v566, %v681
        %v753 = vsub.f32 %v568, %v681
        %v754 = vsub.f32 %v572, %v684
        %v755 = vsub.f32 %v574, %v684
        %v756 = vsub.f32 %v576, %v687
        %v757 = vsub.f32 %v578, %v687
        %v758 = vsub.f32 %v582, %v690
        %v759 = vsub.f32 %v584, %v690
        %v760 = vsub.f32 %v586, %v693
        %v761 = vsub.f32 %v588, %v693
        %v762 = vsub.f32 %v592, %v696
        %v763 = vsub.f32 %v594, %v696
        %v764 = vsub.f32 %v596, %v699
        %v765 = vsub.f32 %v598, %v699
        %v766 = vsub.f32 %v602, %v702
        %v767 = vsub.f32 %v604, %v702
        %v768 = vsub.f32 %v606, %v705
        %v769 = vsub.f32 %v608, %v705
        %v770 = vmul.f32 %v706, 1.442695
        %v771 = vpow.pop %v770
        %v772 = vmul.f32 %v707, 1.442695
        %v773 = vpow.pop %v772
        %v774 = vmul.f32 %v708, 1.442695
        %v775 = vpow.pop %v774
        %v776 = vmul.f32 %v709, 1.442695
        %v777 = vpow.pop %v776
        %v778 = vmul.f32 %v710, 1.442695
        %v779 = vpow.pop %v778
        %v780 = vmul.f32 %v711, 1.442695
        %v781 = vpow.pop %v780
        %v782 = vmul.f32 %v712, 1.442695
        %v783 = vpow.pop %v782
        %v784 = vmul.f32 %v713, 1.442695
        %v785 = vpow.pop %v784
        %v786 = vmul.f32 %v714, 1.442695
        %v787 = vpow.pop %v786
        %v788 = vmul.f32 %v715, 1.442695
        %v789 = vpow.pop %v788
        %v790 = vmul.f32 %v716, 1.442695
        %v791 = vpow.pop %v790
        %v792 = vmul.f32 %v717, 1.442695
        %v793 = vpow.pop %v792
        %v794 = vmul.f32 %v718, 1.442695
        %v795 = vpow.pop %v794
        %v796 = vmul.f32 %v719, 1.442695
        %v797 = vpow.pop %v796
        %v798 = vmul.f32 %v720, 1.442695
        %v799 = vpow.pop %v798
        %v800 = vmul.f32 %v721, 1.442695
        %v801 = vpow.pop %v800
        %v802 = vmul.f32 %v722, 1.442695
        %v803 = vpow.pop %v802
        %v804 = vmul.f32 %v723, 1.442695
        %v805 = vpow.pop %v804
        %v806 = vmul.f32 %v724, 1.442695
        %v807 = vpow.pop %v806
        %v808 = vmul.f32 %v725, 1.442695
        %v809 = vpow.pop %v808
        %v810 = vmul.f32 %v726, 1.442695
        %v811 = vpow.pop %v810
        %v812 = vmul.f32 %v727, 1.442695
        %v813 = vpow.pop %v812
        %v814 = vmul.f32 %v728, 1.442695
        %v815 = vpow.pop %v814
        %v816 = vmul.f32 %v729, 1.442695
        %v817 = vpow.pop %v816
        %v818 = vmul.f32 %v730, 1.442695
        %v819 = vpow.pop %v818
        %v820 = vmul.f32 %v731, 1.442695
        %v821 = vpow.pop %v820
        %v822 = vmul.f32 %v732, 1.442695
        %v823 = vpow.pop %v822
        %v824 = vmul.f32 %v733, 1.442695
        %v825 = vpow.pop %v824
        %v826 = vmul.f32 %v734, 1.442695
        %v827 = vpow.pop %v826
        %v828 = vmul.f32 %v735, 1.442695
        %v829 = vpow.pop %v828
        %v830 = vmul.f32 %v736, 1.442695
        %v831 = vpow.pop %v830
        %v832 = vmul.f32 %v737, 1.442695
        %v833 = vpow.pop %v832
        %v834 = vmul.f32 %v738, 1.442695
        %v835 = vpow.pop %v834
        %v836 = vmul.f32 %v739, 1.442695
        %v837 = vpow.pop %v836
        %v838 = vmul.f32 %v740, 1.442695
        %v839 = vpow.pop %v838
        %v840 = vmul.f32 %v741, 1.442695
        %v841 = vpow.pop %v840
        %v842 = vmul.f32 %v742, 1.442695
        %v843 = vpow.pop %v842
        %v844 = vmul.f32 %v743, 1.442695
        %v845 = vpow.pop %v844
        %v846 = vmul.f32 %v744, 1.442695
        %v847 = vpow.pop %v846
        %v848 = vmul.f32 %v745, 1.442695
        %v849 = vpow.pop %v848
        %v850 = vmul.f32 %v746, 1.442695
        %v851 = vpow.pop %v850
        %v852 = vmul.f32 %v747, 1.442695
        %v853 = vpow.pop %v852
        %v854 = vmul.f32 %v748, 1.442695
        %v855 = vpow.pop %v854
        %v856 = vmul.f32 %v749, 1.442695
        %v857 = vpow.pop %v856
        %v858 = vmul.f32 %v750, 1.442695
        %v859 = vpow.pop %v858
        %v860 = vmul.f32 %v751, 1.442695
        %v861 = vpow.pop %v860
        %v862 = vmul.f32 %v752, 1.442695
        %v863 = vpow.pop %v862
        %v864 = vmul.f32 %v753, 1.442695
        %v865 = vpow.pop %v864
        %v866 = vmul.f32 %v754, 1.442695
        %v867 = vpow.pop %v866
        %v868 = vmul.f32 %v755, 1.442695
        %v869 = vpow.pop %v868
        %v870 = vmul.f32 %v756, 1.442695
        %v871 = vpow.pop %v870
        %v872 = vmul.f32 %v757, 1.442695
        %v873 = vpow.pop %v872
        %v874 = vmul.f32 %v758, 1.442695
        %v875 = vpow.pop %v874
        %v876 = vmul.f32 %v759, 1.442695
        %v877 = vpow.pop %v876
        %v878 = vmul.f32 %v760, 1.442695
        %v879 = vpow.pop %v878
        %v880 = vmul.f32 %v761, 1.442695
        %v881 = vpow.pop %v880
        %v882 = vmul.f32 %v762, 1.442695
        %v883 = vpow.pop %v882
        %v884 = vmul.f32 %v763, 1.442695
        %v885 = vpow.pop %v884
        %v886 = vmul.f32 %v764, 1.442695
        %v887 = vpow.pop %v886
        %v888 = vmul.f32 %v765, 1.442695
        %v889 = vpow.pop %v888
        %v890 = vmul.f32 %v766, 1.442695
        %v891 = vpow.pop %v890
        %v892 = vmul.f32 %v767, 1.442695
        %v893 = vpow.pop %v892
        %v894 = vmul.f32 %v768, 1.442695
        %v895 = vpow.pop %v894
        %v896 = vmul.f32 %v769, 1.442695
        %v897 = vpow.pop %v896
        %v898 = vadd.f32 %v771, %v773
        %899 = vadd.xlane.f32.xlu0 %v898
        %v900 = vpop.xlane.xlu0 %899
        %v901 = vadd.f32 %v775, %v777
        %902 = vadd.xlane.f32.xlu0 %v901
        %v903 = vpop.xlane.xlu0 %902
        %v904 = vadd.f32 %v779, %v781
        %905 = vadd.xlane.f32.xlu0 %v904
        %v906 = vpop.xlane.xlu0 %905
        %v907 = vadd.f32 %v783, %v785
        %908 = vadd.xlane.f32.xlu0 %v907
        %v909 = vpop.xlane.xlu0 %908
        %v910 = vadd.f32 %v787, %v789
        %911 = vadd.xlane.f32.xlu0 %v910
        %v912 = vpop.xlane.xlu0 %911
        %v913 = vadd.f32 %v791, %v793
        %914 = vadd.xlane.f32.xlu0 %v913
        %v915 = vpop.xlane.xlu0 %914
        %v916 = vadd.f32 %v795, %v797
        %917 = vadd.xlane.f32.xlu0 %v916
        %v918 = vpop.xlane.xlu0 %917
        %v919 = vadd.f32 %v799, %v801
        %920 = vadd.xlane.f32.xlu0 %v919
        %v921 = vpop.xlane.xlu0 %920
        %v922 = vadd.f32 %v803, %v805
        %923 = vadd.xlane.f32.xlu0 %v922
        %v924 = vpop.xlane.xlu0 %923
        %v925 = vadd.f32 %v807, %v809
        %926 = vadd.xlane.f32.xlu0 %v925
        %v927 = vpop.xlane.xlu0 %926
        %v928 = vadd.f32 %v811, %v813
        %929 = vadd.xlane.f32.xlu0 %v928
        %v930 = vpop.xlane.xlu0 %929
        %v931 = vadd.f32 %v815, %v817
        %932 = vadd.xlane.f32.xlu0 %v931
        %v933 = vpop.xlane.xlu0 %932
        %v934 = vadd.f32 %v819, %v821
        %935 = vadd.xlane.f32.xlu0 %v934
        %v936 = vpop.xlane.xlu0 %935
        %v937 = vadd.f32 %v823, %v825
        %938 = vadd.xlane.f32.xlu0 %v937
        %v939 = vpop.xlane.xlu0 %938
        %v940 = vadd.f32 %v827, %v829
        %941 = vadd.xlane.f32.xlu0 %v940
        %v942 = vpop.xlane.xlu0 %941
        %v943 = vadd.f32 %v831, %v833
        %944 = vadd.xlane.f32.xlu0 %v943
        %v945 = vpop.xlane.xlu0 %944
        %v946 = vadd.f32 %v835, %v837
        %947 = vadd.xlane.f32.xlu0 %v946
        %v948 = vpop.xlane.xlu0 %947
        %v949 = vadd.f32 %v839, %v841
        %950 = vadd.xlane.f32.xlu0 %v949
        %v951 = vpop.xlane.xlu0 %950
        %v952 = vadd.f32 %v843, %v845
        %953 = vadd.xlane.f32.xlu0 %v952
        %v954 = vpop.xlane.xlu0 %953
        %v955 = vadd.f32 %v847, %v849
        %956 = vadd.xlane.f32.xlu0 %v955
        %v957 = vpop.xlane.xlu0 %956
        %v958 = vadd.f32 %v851, %v853
        %959 = vadd.xlane.f32.xlu0 %v958
        %v960 = vpop.xlane.xlu0 %959
        %v961 = vadd.f32 %v855, %v857
        %962 = vadd.xlane.f32.xlu0 %v961
        %v963 = vpop.xlane.xlu0 %962
        %v964 = vadd.f32 %v859, %v861
        %965 = vadd.xlane.f32.xlu0 %v964
        %v966 = vpop.xlane.xlu0 %965
        %v967 = vadd.f32 %v863, %v865
        %968 = vadd.xlane.f32.xlu0 %v967
        %v969 = vpop.xlane.xlu0 %968
        %v970 = vadd.f32 %v867, %v869
        %971 = vadd.xlane.f32.xlu0 %v970
        %v972 = vpop.xlane.xlu0 %971
        %v973 = vadd.f32 %v871, %v873
        %974 = vadd.xlane.f32.xlu0 %v973
        %v975 = vpop.xlane.xlu0 %974
        %v976 = vadd.f32 %v875, %v877
        %977 = vadd.xlane.f32.xlu0 %v976
        %v978 = vpop.xlane.xlu0 %977
        %v979 = vadd.f32 %v879, %v881
        %980 = vadd.xlane.f32.xlu0 %v979
        %v981 = vpop.xlane.xlu0 %980
        %v982 = vadd.f32 %v883, %v885
        %983 = vadd.xlane.f32.xlu0 %v982
        %v984 = vpop.xlane.xlu0 %983
        %v985 = vadd.f32 %v887, %v889
        %986 = vadd.xlane.f32.xlu0 %v985
        %v987 = vpop.xlane.xlu0 %986
        %v988 = vadd.f32 %v891, %v893
        %989 = vadd.xlane.f32.xlu0 %v988
        %v990 = vpop.xlane.xlu0 %989
        %v991 = vadd.f32 %v895, %v897
        %992 = vadd.xlane.f32.xlu0 %v991
        %v993 = vpop.xlane.xlu0 %992
        %v994 = vrcp.pop %v900
        %v995 = vrcp.pop %v903
        %v996 = vrcp.pop %v906
        %v997 = vrcp.pop %v909
        %v998 = vrcp.pop %v912
        %v999 = vrcp.pop %v915
        %v1000 = vrcp.pop %v918
        %v1001 = vrcp.pop %v921
        %v1002 = vrcp.pop %v924
        %v1003 = vrcp.pop %v927
        %v1004 = vrcp.pop %v930
        %v1005 = vrcp.pop %v933
        %v1006 = vrcp.pop %v936
        %v1007 = vrcp.pop %v939
        %v1008 = vrcp.pop %v942
        %v1009 = vrcp.pop %v945
        %v1010 = vrcp.pop %v948
        %v1011 = vrcp.pop %v951
        %v1012 = vrcp.pop %v954
        %v1013 = vrcp.pop %v957
        %v1014 = vrcp.pop %v960
        %v1015 = vrcp.pop %v963
        %v1016 = vrcp.pop %v966
        %v1017 = vrcp.pop %v969
        %v1018 = vrcp.pop %v972
        %v1019 = vrcp.pop %v975
        %v1020 = vrcp.pop %v978
        %v1021 = vrcp.pop %v981
        %v1022 = vrcp.pop %v984
        %v1023 = vrcp.pop %v987
        %v1024 = vrcp.pop %v990
        %v1025 = vrcp.pop %v993
        %v1026 = vmul.f32 %v771, %v994
        %v1027 = vmul.f32 %v773, %v994
        %v1028 = vmul.f32 %v775, %v995
        %v1029 = vmul.f32 %v777, %v995
        %v1030 = vmul.f32 %v779, %v996
        %v1031 = vmul.f32 %v781, %v996
        %v1032 = vmul.f32 %v783, %v997
        %v1033 = vmul.f32 %v785, %v997
        %v1034 = vmul.f32 %v787, %v998
        %v1035 = vmul.f32 %v789, %v998
        %v1036 = vmul.f32 %v791, %v999
        %v1037 = vmul.f32 %v793, %v999
        %v1038 = vmul.f32 %v795, %v1000
        %v1039 = vmul.f32 %v797, %v1000
        %v1040 = vmul.f32 %v799, %v1001
        %v1041 = vmul.f32 %v801, %v1001
        %v1042 = vmul.f32 %v803, %v1002
        %v1043 = vmul.f32 %v805, %v1002
        %v1044 = vmul.f32 %v807, %v1003
        %v1045 = vmul.f32 %v809, %v1003
        %v1046 = vmul.f32 %v811, %v1004
        %v1047 = vmul.f32 %v813, %v1004
        %v1048 = vmul.f32 %v815, %v1005
        %v1049 = vmul.f32 %v817, %v1005
        %v1050 = vmul.f32 %v819, %v1006
        %v1051 = vmul.f32 %v821, %v1006
        %v1052 = vmul.f32 %v823, %v1007
        %v1053 = vmul.f32 %v825, %v1007
        %v1054 = vmul.f32 %v827, %v1008
        %v1055 = vmul.f32 %v829, %v1008
        %v1056 = vmul.f32 %v831, %v1009
        %v1057 = vmul.f32 %v833, %v1009
        %v1058 = vmul.f32 %v835, %v1010
        %v1059 = vmul.f32 %v837, %v1010
        %v1060 = vmul.f32 %v839, %v1011
        %v1061 = vmul.f32 %v841, %v1011
        %v1062 = vmul.f32 %v843, %v1012
        %v1063 = vmul.f32 %v845, %v1012
        %v1064 = vmul.f32 %v847, %v1013
        %v1065 = vmul.f32 %v849, %v1013
        %v1066 = vmul.f32 %v851, %v1014
        %v1067 = vmul.f32 %v853, %v1014
        %v1068 = vmul.f32 %v855, %v1015
        %v1069 = vmul.f32 %v857, %v1015
        %v1070 = vmul.f32 %v859, %v1016
        %v1071 = vmul.f32 %v861, %v1016
        %v1072 = vmul.f32 %v863, %v1017
        %v1073 = vmul.f32 %v865, %v1017
        %v1074 = vmul.f32 %v867, %v1018
        %v1075 = vmul.f32 %v869, %v1018
        %v1076 = vmul.f32 %v871, %v1019
        %v1077 = vmul.f32 %v873, %v1019
        %v1078 = vmul.f32 %v875, %v1020
        %v1079 = vmul.f32 %v877, %v1020
        %v1080 = vmul.f32 %v879, %v1021
        %v1081 = vmul.f32 %v881, %v1021
        %v1082 = vmul.f32 %v883, %v1022
        %v1083 = vmul.f32 %v885, %v1022
        %v1084 = vmul.f32 %v887, %v1023
        %v1085 = vmul.f32 %v889, %v1023
        %v1086 = vmul.f32 %v891, %v1024
        %v1087 = vmul.f32 %v893, %v1024
        %v1088 = vmul.f32 %v895, %v1025
        %v1089 = vmul.f32 %v897, %v1025
        %v1090 = vpack.c.bf16 %v1028, %v1026
        %v1091 = vpack.c.bf16 %v1029, %v1027
        %v1092 = vpack.c.bf16 %v1032, %v1030
        %v1093 = vpack.c.bf16 %v1033, %v1031
        %v1094 = vpack.c.bf16 %v1036, %v1034
        %v1095 = vpack.c.bf16 %v1037, %v1035
        %v1096 = vpack.c.bf16 %v1040, %v1038
        %v1097 = vpack.c.bf16 %v1041, %v1039
        %v1098 = vpack.c.bf16 %v1044, %v1042
        %v1099 = vpack.c.bf16 %v1045, %v1043
        %v1100 = vpack.c.bf16 %v1048, %v1046
        %v1101 = vpack.c.bf16 %v1049, %v1047
        %v1102 = vpack.c.bf16 %v1052, %v1050
        %v1103 = vpack.c.bf16 %v1053, %v1051
        %v1104 = vpack.c.bf16 %v1056, %v1054
        %v1105 = vpack.c.bf16 %v1057, %v1055
        %v1106 = vpack.c.bf16 %v1060, %v1058
        %v1107 = vpack.c.bf16 %v1061, %v1059
        %v1108 = vpack.c.bf16 %v1064, %v1062
        %v1109 = vpack.c.bf16 %v1065, %v1063
        %v1110 = vpack.c.bf16 %v1068, %v1066
        %v1111 = vpack.c.bf16 %v1069, %v1067
        %v1112 = vpack.c.bf16 %v1072, %v1070
        %v1113 = vpack.c.bf16 %v1073, %v1071
        %v1114 = vpack.c.bf16 %v1076, %v1074
        %v1115 = vpack.c.bf16 %v1077, %v1075
        %v1116 = vpack.c.bf16 %v1080, %v1078
        %v1117 = vpack.c.bf16 %v1081, %v1079
        %v1118 = vpack.c.bf16 %v1084, %v1082
        %v1119 = vpack.c.bf16 %v1085, %v1083
        %v1120 = vpack.c.bf16 %v1088, %v1086
        %v1121 = vpack.c.bf16 %v1089, %v1087
        %v1122 = vld [vmem:[%s2] sm:$0xf]
        %v1123 = vld [vmem:[%s2 + $0x4] sm:$0xf]
        %v1124 = vld [vmem:[%s2 + $0x8] sm:$0xf]
        %v1125 = vld [vmem:[%s2 + $0xc] sm:$0xf]
        %v1126 = vld [vmem:[%s2 + $0x10] sm:$0xf]
        %v1127 = vld [vmem:[%s2 + $0x14] sm:$0xf]
        %v1128 = vld [vmem:[%s2 + $0x18] sm:$0x1]
        %v1136 = vunpack.c.l.b16 %v1122
        %v1137 = vunpack.c.l.b16 %v1123
        %v1138 = vunpack.c.l.b16 %v1124
        %v1139 = vunpack.c.l.b16 %v1125
        %v1140 = vunpack.c.l.b16 %v1126
        %v1141 = vunpack.c.l.b16 %v1127
        %v1142 = vunpack.c.l.b16 %v1128
        %v1143 = vpack.c.b16 %v1137, %v1136
        %v1144 = vpack.c.b16 %v1139, %v1138
        %v1145 = vpack.c.b16 %v1141, %v1140
        %v1146 = vpack.c.b16 %v1142, %v1142
        %v1148 = vsel %vm361, %v1143, 0
        %v1151 = vsel %vm361, %v1144, 0
        %v1154 = vsel %vm361, %v1145, 0
        %v1157 = vsel %vm361, %v1146, 0
        %v1160 = vsel %vm410, %v316, 0
        %v1163 = vsel %vm410, %v317, 0
        %1165 = vmatprep.subr.bf16.mxu0 0
        %1166 = vmatpush1.bf16.msra.mxu0 0
        %1167 = vmatprep.subr.bf16.mxu0 0
        %1168 = vmatpush1.bf16.msra.mxu0 0
        %1169 = vmatprep.subr.bf16.mxu0 0
        %1170 = vmatpush1.bf16.msra.mxu0 0
        %1171 = vmatprep.subr.bf16.mxu0 0
        %1172 = vmatpush1.bf16.msra.mxu0 0
        %1173 = vmatprep.subr.bf16.mxu0 0
        %1174 = vmatpush1.bf16.msra.mxu0 0
        %1175 = vmatprep.subr.bf16.mxu0 0
        %1176 = vmatpush1.bf16.msra.mxu0 0
        %1177 = vmatprep.subr.bf16.mxu0 0
        %1178 = vmatpush1.bf16.msra.mxu0 0
        %1179 = vmatprep.subr.bf16.mxu0 %v1163
        %1180 = vmatpush1.bf16.msra.mxu0 %v1160
        %1181 = vmatprep.subr.bf16.mxu0 0
        %1182 = vmatpush2.bf16.msra.mxu0 0
        %1183 = vmatprep.subr.bf16.mxu0 0
        %1184 = vmatpush2.bf16.msra.mxu0 0
        %1185 = vmatprep.subr.bf16.mxu0 0
        %1186 = vmatpush2.bf16.msra.mxu0 0
        %1187 = vmatprep.subr.bf16.mxu0 0
        %1188 = vmatpush2.bf16.msra.mxu0 0
        %1189 = vmatprep.subr.bf16.mxu0 0
        %1190 = vmatpush2.bf16.msra.mxu0 0
        %1191 = vmatprep.subr.bf16.mxu0 0
        %1192 = vmatpush2.bf16.msra.mxu0 0
        %1193 = vmatprep.subr.bf16.mxu0 0
        %1194 = vmatpush2.bf16.msra.mxu0 0
        %1195 = vmatprep.subr.bf16.mxu0 0
        %1196 = vmatpush2.bf16.msra.mxu0 0
        %1197 = vmatprep.mubr.bf16.mxu0 0
        %1198 = vmatmul.mubr.bf16.gmra.mxu0 %v1148
        %v1199 = vpop.f32.mrf.mxu0
        %v1200 = vadd.f32 0.0, %v1199
        %v1201 = vpop.f32.mrf.mxu0
        %v1202 = vadd.f32 0.0, %v1201
        %v1203 = vpop.f32.mrf.mxu0
        %v1204 = vadd.f32 0.0, %v1203
        %v1205 = vpop.f32.mrf.mxu0
        %v1206 = vadd.f32 0.0, %v1205
        %1207 = vmatprep.mubr.bf16.mxu0 0
        %1208 = vmatmul.mubr.bf16.gmra.mxu0 %v1151
        %v1209 = vpop.f32.mrf.mxu0
        %v1210 = vadd.f32 0.0, %v1209
        %v1211 = vpop.f32.mrf.mxu0
        %v1212 = vadd.f32 0.0, %v1211
        %v1213 = vpop.f32.mrf.mxu0
        %v1214 = vadd.f32 0.0, %v1213
        %v1215 = vpop.f32.mrf.mxu0
        %v1216 = vadd.f32 0.0, %v1215
        %1217 = vmatprep.mubr.bf16.mxu0 0
        %1218 = vmatmul.mubr.bf16.gmra.mxu0 %v1154
        %v1219 = vpop.f32.mrf.mxu0
        %v1220 = vadd.f32 0.0, %v1219
        %v1221 = vpop.f32.mrf.mxu0
        %v1222 = vadd.f32 0.0, %v1221
        %v1223 = vpop.f32.mrf.mxu0
        %v1224 = vadd.f32 0.0, %v1223
        %v1225 = vpop.f32.mrf.mxu0
        %v1226 = vadd.f32 0.0, %v1225
        %1227 = vmatprep.mubr.bf16.mxu0 0
        %1228 = vmatmul.mubr.bf16.gmra.mxu0 %v1157
        %v1229 = vpop.f32.mrf.mxu0
        %v1230 = vadd.f32 0.0, %v1229
        %v1231 = vpop.f32.mrf.mxu0
        %v1232 = vadd.f32 0.0, %v1231
        %v1233 = vpop.f32.mrf.mxu0
        %v1234 = vpop.f32.mrf.mxu0
        %1235 = vdwg.mxu0
        %v1236 = vld [vmem:[#allocation2] sm:$0xff]
        %v1237 = vld [vmem:[#allocation2 + $0x8] sm:$0xff]
        %v1238 = vld [vmem:[#allocation2 + $0x10] sm:$0xff]
        %v1239 = vld [vmem:[#allocation2 + $0x18] sm:$0xff]
        %v1240 = vld [vmem:[#allocation2 + $0x20] sm:$0xff]
        %v1241 = vld [vmem:[#allocation2 + $0x28] sm:$0xff]
        %v1242 = vld [vmem:[#allocation2 + $0x30] sm:$0xff]
        %v1243 = vld [vmem:[#allocation2 + $0x38] sm:$0xff]
        %v1244 = vld [vmem:[#allocation2 + $0x40] sm:$0xff]
        %v1245 = vld [vmem:[#allocation2 + $0x48] sm:$0xff]
        %v1246 = vld [vmem:[#allocation2 + $0x50] sm:$0xff]
        %v1247 = vld [vmem:[#allocation2 + $0x58] sm:$0xff]
        %v1248 = vld [vmem:[#allocation2 + $0x60] sm:$0x3]
        %v1249 = vld [vmem:[#allocation2 + $0x68] sm:$0x3]
        %v1250 = vpack.c.bf16 %v1204, %v1200
        %v1251 = vpack.c.bf16 %v1206, %v1202
        %v1252 = vpack.c.bf16 %v1214, %v1210
        %v1253 = vpack.c.bf16 %v1216, %v1212
        %v1254 = vpack.c.bf16 %v1224, %v1220
        %v1255 = vpack.c.bf16 %v1226, %v1222
        %v1256 = vpack.c.bf16 %v1230, %v1230
        %v1257 = vpack.c.bf16 %v1232, %v1232
        %1258 = vmatprep.subr.bf16.mxu0 %v1105
        %1259 = vmatpush1.bf16.msra.mxu0 %v1104
        %1260 = vmatprep.subr.bf16.mxu0 %v1103
        %1261 = vmatpush1.bf16.msra.mxu0 %v1102
        %1262 = vmatprep.subr.bf16.mxu0 %v1101
        %1263 = vmatpush1.bf16.msra.mxu0 %v1100
        %1264 = vmatprep.subr.bf16.mxu0 %v1099
        %1265 = vmatpush1.bf16.msra.mxu0 %v1098
        %1266 = vmatprep.subr.bf16.mxu0 %v1097
        %1267 = vmatpush1.bf16.msra.mxu0 %v1096
        %1268 = vmatprep.subr.bf16.mxu0 %v1095
        %1269 = vmatpush1.bf16.msra.mxu0 %v1094
        %1270 = vmatprep.subr.bf16.mxu0 %v1093
        %1271 = vmatpush1.bf16.msra.mxu0 %v1092
        %1272 = vmatprep.subr.bf16.mxu0 %v1091
        %1273 = vmatpush1.bf16.msra.mxu0 %v1090
        %1274 = vmatprep.subr.bf16.mxu0 %v1121
        %1275 = vmatpush2.bf16.msra.mxu0 %v1120
        %1276 = vmatprep.subr.bf16.mxu0 %v1119
        %1277 = vmatpush2.bf16.msra.mxu0 %v1118
        %1278 = vmatprep.subr.bf16.mxu0 %v1117
        %1279 = vmatpush2.bf16.msra.mxu0 %v1116
        %1280 = vmatprep.subr.bf16.mxu0 %v1115
        %1281 = vmatpush2.bf16.msra.mxu0 %v1114
        %1282 = vmatprep.subr.bf16.mxu0 %v1113
        %1283 = vmatpush2.bf16.msra.mxu0 %v1112
        %1284 = vmatprep.subr.bf16.mxu0 %v1111
        %1285 = vmatpush2.bf16.msra.mxu0 %v1110
        %1286 = vmatprep.subr.bf16.mxu0 %v1109
        %1287 = vmatpush2.bf16.msra.mxu0 %v1108
        %1288 = vmatprep.subr.bf16.mxu0 %v1107
        %1289 = vmatpush2.bf16.msra.mxu0 %v1106
        %1290 = vmatprep.mubr.bf16.mxu0 %v1251
        %1291 = vmatmul.mubr.bf16.gmra.mxu0 %v1250
        %v1292 = vpop.f32.mrf.mxu0
        %v1293 = vadd.f32 0.0, %v1292
        %v1294 = vpop.f32.mrf.mxu0
        %v1295 = vadd.f32 0.0, %v1294
        %v1296 = vpop.f32.mrf.mxu0
        %v1297 = vadd.f32 0.0, %v1296
        %v1298 = vpop.f32.mrf.mxu0
        %v1299 = vadd.f32 0.0, %v1298
        %1300 = vmatprep.mubr.bf16.mxu0 %v1253
        %1301 = vmatmul.mubr.bf16.gmra.mxu0 %v1252
        %v1302 = vpop.f32.mrf.mxu0
        %v1303 = vadd.f32 0.0, %v1302
        %v1304 = vpop.f32.mrf.mxu0
        %v1305 = vadd.f32 0.0, %v1304
        %v1306 = vpop.f32.mrf.mxu0
        %v1307 = vadd.f32 0.0, %v1306
        %v1308 = vpop.f32.mrf.mxu0
        %v1309 = vadd.f32 0.0, %v1308
        %1310 = vmatprep.mubr.bf16.mxu0 %v1255
        %1311 = vmatmul.mubr.bf16.gmra.mxu0 %v1254
        %v1312 = vpop.f32.mrf.mxu0
        %v1313 = vadd.f32 0.0, %v1312
        %v1314 = vpop.f32.mrf.mxu0
        %v1315 = vadd.f32 0.0, %v1314
        %v1316 = vpop.f32.mrf.mxu0
        %v1317 = vadd.f32 0.0, %v1316
        %v1318 = vpop.f32.mrf.mxu0
        %v1319 = vadd.f32 0.0, %v1318
        %1320 = vmatprep.mubr.bf16.mxu0 %v1257
        %1321 = vmatmul.mubr.bf16.gmra.mxu0 %v1256
        %v1322 = vpop.f32.mrf.mxu0
        %v1323 = vadd.f32 0.0, %v1322
        %v1324 = vpop.f32.mrf.mxu0
        %v1325 = vadd.f32 0.0, %v1324
        %v1326 = vpop.f32.mrf.mxu0
        %v1327 = vpop.f32.mrf.mxu0
        %1328 = vdwg.mxu0
        %v1329 = vadd.f32 %v1236, %v1293
        %v1330 = vadd.f32 %v1237, %v1295
        %v1331 = vadd.f32 %v1238, %v1297
        %v1332 = vadd.f32 %v1239, %v1299
        %v1333 = vadd.f32 %v1240, %v1303
        %v1334 = vadd.f32 %v1241, %v1305
        %v1335 = vadd.f32 %v1242, %v1307
        %v1336 = vadd.f32 %v1243, %v1309
        %v1337 = vadd.f32 %v1244, %v1313
        %v1338 = vadd.f32 %v1245, %v1315
        %v1339 = vadd.f32 %v1246, %v1317
        %v1340 = vadd.f32 %v1247, %v1319
        %v1341 = vadd.f32 %v1248, %v1323
        %v1342 = vadd.f32 %v1249, %v1325
        %1343 = vst [vmem:[#allocation2] sm:$0xff] %v1329
        %1344 = vst [vmem:[#allocation2 + $0x8] sm:$0xff] %v1330
        %1345 = vst [vmem:[#allocation2 + $0x10] sm:$0xff] %v1331
        %1346 = vst [vmem:[#allocation2 + $0x18] sm:$0xff] %v1332
        %1347 = vst [vmem:[#allocation2 + $0x20] sm:$0xff] %v1333
        %1348 = vst [vmem:[#allocation2 + $0x28] sm:$0xff] %v1334
        %1349 = vst [vmem:[#allocation2 + $0x30] sm:$0xff] %v1335
        %1350 = vst [vmem:[#allocation2 + $0x38] sm:$0xff] %v1336
        %1351 = vst [vmem:[#allocation2 + $0x40] sm:$0xff] %v1337
        %1352 = vst [vmem:[#allocation2 + $0x48] sm:$0xff] %v1338
        %1353 = vst [vmem:[#allocation2 + $0x50] sm:$0xff] %v1339
        %1354 = vst [vmem:[#allocation2 + $0x58] sm:$0xff] %v1340
        %1355 = vst [vmem:[#allocation2 + $0x60] sm:$0x3] %v1341
        %1356 = vst [vmem:[#allocation2 + $0x68] sm:$0x3] %v1342
        // Predicated region
        $region45: #{tpu_custom_call.1} parent=39 // pred_check
          %p1357 = pneg %p289
        $region46: #{tpu_custom_call.1} parent=39 // pred_check_branch
          %1359 = sbr.rel (%p1357) target = $region48
        $region47: #{tpu_custom_call.1} parent=39 // pred_region
          %v1360 = vld [vmem:[%s3] sm:$0x3]
          %v1361 = vld [vmem:[%s287] sm:$0xf]
          %v1362 = vld [vmem:[#allocation2] sm:$0xff]
          %v1363 = vld [vmem:[#allocation2 + $0x8] sm:$0xff]
          %v1364 = vld [vmem:[#allocation2 + $0x10] sm:$0xff]
          %v1365 = vld [vmem:[#allocation2 + $0x18] sm:$0xff]
          %v1366 = vld [vmem:[#allocation2 + $0x20] sm:$0xff]
          %v1367 = vld [vmem:[#allocation2 + $0x28] sm:$0xff]
          %v1368 = vld [vmem:[#allocation2 + $0x30] sm:$0xff]
          %v1369 = vld [vmem:[#allocation2 + $0x38] sm:$0xff]
          %v1370 = vld [vmem:[#allocation2 + $0x40] sm:$0xff]
          %v1371 = vld [vmem:[#allocation2 + $0x48] sm:$0xff]
          %v1372 = vld [vmem:[#allocation2 + $0x50] sm:$0xff]
          %v1373 = vld [vmem:[#allocation2 + $0x58] sm:$0xff]
          %v1374 = vld [vmem:[#allocation2 + $0x60] sm:$0x3]
          %v1375 = vld [vmem:[#allocation2 + $0x68] sm:$0x3]
          %vm1376 = vcmask 408576
          %v1378 = vsel %vm1376, %v1361, 0
          %v1381 = vsel %vm410, %v1374, 0
          %v1384 = vsel %vm410, %v1375, 0
          %1386 = vmatprep.subr.mxu0 0.0
          %1387 = vmatpush1.msra.mxu0 0.0
          %1388 = vmatprep.subr.mxu0 0.0
          %1389 = vmatpush1.msra.mxu0 0.0
          %1390 = vmatprep.subr.mxu0 0.0
          %1391 = vmatpush1.msra.mxu0 0.0
          %1392 = vmatprep.subr.mxu0 0.0
          %1393 = vmatpush1.msra.mxu0 0.0
          %1394 = vmatprep.subr.mxu0 0.0
          %1395 = vmatpush1.msra.mxu0 0.0
          %1396 = vmatprep.subr.mxu0 0.0
          %1397 = vmatpush1.msra.mxu0 0.0
          %1398 = vmatprep.subr.mxu0 0.0
          %1399 = vmatpush1.msra.mxu0 0.0
          %1400 = vmatprep.subr.mxu0 0.0
          %1401 = vmatpush1.msra.mxu0 0.0
          %1402 = vmatprep.subr.mxu0 0.0
          %1403 = vmatpush1.msra.mxu0 0.0
          %1404 = vmatprep.subr.mxu0 %v1384
          %1405 = vmatpush1.msra.mxu0 %v1381
          %1406 = vmatprep.subr.mxu0 %v1373
          %1407 = vmatpush1.msra.mxu0 %v1372
          %1408 = vmatprep.subr.mxu0 %v1371
          %1409 = vmatpush1.msra.mxu0 %v1370
          %1410 = vmatprep.subr.mxu0 %v1369
          %1411 = vmatpush1.msra.mxu0 %v1368
          %1412 = vmatprep.subr.mxu0 %v1367
          %1413 = vmatpush1.msra.mxu0 %v1366
          %1414 = vmatprep.subr.mxu0 %v1365
          %1415 = vmatpush1.msra.mxu0 %v1364
          %1416 = vmatprep.subr.mxu0 %v1363
          %1417 = vmatpush1.msra.mxu0 %v1362
          %1418 = vmatprep.subr.mxu0 0.0
          %1419 = vmatpush2.msra.mxu0 0.0
          %1420 = vmatprep.subr.mxu0 0.0
          %1421 = vmatpush2.msra.mxu0 0.0
          %1422 = vmatprep.subr.mxu0 0.0
          %1423 = vmatpush2.msra.mxu0 0.0
          %1424 = vmatprep.subr.mxu0 0.0
          %1425 = vmatpush2.msra.mxu0 0.0
          %1426 = vmatprep.subr.mxu0 0.0
          %1427 = vmatpush2.msra.mxu0 0.0
          %1428 = vmatprep.subr.mxu0 0.0
          %1429 = vmatpush2.msra.mxu0 0.0
          %1430 = vmatprep.subr.mxu0 0.0
          %1431 = vmatpush2.msra.mxu0 0.0
          %1432 = vmatprep.subr.mxu0 0.0
          %1433 = vmatpush2.msra.mxu0 0.0
          %1434 = vmatprep.subr.mxu0 0.0
          %1435 = vmatpush2.msra.mxu0 0.0
          %1436 = vmatprep.subr.mxu0 0.0
          %1437 = vmatpush2.msra.mxu0 0.0
          %1438 = vmatprep.subr.mxu0 0.0
          %1439 = vmatpush2.msra.mxu0 0.0
          %1440 = vmatprep.subr.mxu0 0.0
          %1441 = vmatpush2.msra.mxu0 0.0
          %1442 = vmatprep.subr.mxu0 0.0
          %1443 = vmatpush2.msra.mxu0 0.0
          %1444 = vmatprep.subr.mxu0 0.0
          %1445 = vmatpush2.msra.mxu0 0.0
          %1446 = vmatprep.subr.mxu0 0.0
          %1447 = vmatpush2.msra.mxu0 0.0
          %1448 = vmatprep.subr.mxu0 0.0
          %1449 = vmatpush2.msra.mxu0 0.0
          %1450 = vmatprep.mubr.f32.mxu0 0.0
          %1451 = vmatmul.mubr.f32.gmra.mxu0 %v1378
          %v1452 = vpop.f32.mrf.mxu0
          %v1453 = vadd.f32 0.0, %v1452
          %v1454 = vpop.f32.mrf.mxu0
          %v1455 = vadd.f32 0.0, %v1454
          %1456 = vdwg.mxu0
          %v1458 = vsel %vm361, %v1360, 0
          %1460 = vmatprep.subr.bf16.mxu0 0
          %1461 = vmatpush1.bf16.msra.mxu0 0
          %1462 = vmatprep.subr.bf16.mxu0 0
          %1463 = vmatpush1.bf16.msra.mxu0 0
          %1464 = vmatprep.subr.bf16.mxu0 0
          %1465 = vmatpush1.bf16.msra.mxu0 0
          %1466 = vmatprep.subr.bf16.mxu0 0
          %1467 = vmatpush1.bf16.msra.mxu0 0
          %1468 = vmatprep.subr.bf16.mxu0 0
          %1469 = vmatpush1.bf16.msra.mxu0 0
          %1470 = vmatprep.subr.bf16.mxu0 0
          %1471 = vmatpush1.bf16.msra.mxu0 0
          %1472 = vmatprep.subr.bf16.mxu0 0
          %1473 = vmatpush1.bf16.msra.mxu0 0
          %1474 = vmatprep.subr.bf16.mxu0 %v415
          %1475 = vmatpush1.bf16.msra.mxu0 %v412
          %1476 = vmatprep.subr.bf16.mxu0 0
          %1477 = vmatpush2.bf16.msra.mxu0 0
          %1478 = vmatprep.subr.bf16.mxu0 0
          %1479 = vmatpush2.bf16.msra.mxu0 0
          %1480 = vmatprep.subr.bf16.mxu0 0
          %1481 = vmatpush2.bf16.msra.mxu0 0
          %1482 = vmatprep.subr.bf16.mxu0 0
          %1483 = vmatpush2.bf16.msra.mxu0 0
          %1484 = vmatprep.subr.bf16.mxu0 0
          %1485 = vmatpush2.bf16.msra.mxu0 0
          %1486 = vmatprep.subr.bf16.mxu0 0
          %1487 = vmatpush2.bf16.msra.mxu0 0
          %1488 = vmatprep.subr.bf16.mxu0 0
          %1489 = vmatpush2.bf16.msra.mxu0 0
          %1490 = vmatprep.subr.bf16.mxu0 0
          %1491 = vmatpush2.bf16.msra.mxu0 0
          %1492 = vmatprep.mubr.bf16.mxu0 0
          %1493 = vmatmul.mubr.bf16.gmra.mxu0 %v1458
          %v1494 = vpop.f32.mrf.mxu0
          %v1495 = vadd.f32 %v1453, %v1494
          %v1496 = vpop.f32.mrf.mxu0
          %v1497 = vadd.f32 %v1455, %v1496
          %v1498 = vpop.f32.mrf.mxu0
          %v1499 = vpop.f32.mrf.mxu0
          %1500 = vdwg.mxu0
          %v1503 = vcombine.low %v1495, %v1497
          %1505 = vst [vmem:[%s268] sm:$0xff] %v1503
        $region48: #{tpu_custom_call.1} parent=39 // pred_fallthru
          _
        %s1506 = sand.u32 %s161, 1
        %s1507 = scalar_lea.sflag [#allocation4], %s1506
        %s1508 = sand.u32 %s161, 1
        %s1509 = smul.addr %s1508, 8
        %s1510 = scalar_lea.vmem [#allocation3], %s1509
        // Predicated region
        $region49: #{tpu_custom_call.1} parent=39 // pred_check
          %p1511 = pneg %p171
        $region50: #{tpu_custom_call.1} parent=39 // pred_check_branch
          %1513 = sbr.rel (%p1511) target = $region52
        $region51: #{tpu_custom_call.1} parent=39 // pred_region
          %s1515 = ssub.s32 128, 128
          %1516 = vsyncadd %s1507, %s1515
          %s1517 = smul.addr %s23, 2
          %s1518 = smul.addr %s1517, 64
          %s1519 = scalar_lea.hbm %s5, %s1518
          %s1521 = sshll.u32 %s1510, 4
          %s1522 = int_to_ptr.vmem [resolvable:$true] %s1521
          %1524 = dma.vmem_to_hbm [thread:$0]  %s1522, 128, %s1519, %s1507
        $region52: #{tpu_custom_call.1} parent=39 // pred_fallthru
          _
      $region40: #{tpu_custom_call.1} parent=5 // pred_fallthru
        _
      %p1525 = scmp.le.s32.totalorder 2, %s14
      // Predicated region
      $region53: #{tpu_custom_call.1} parent=5 // pred_check
        %p1526 = pneg %p1525
      $region54: #{tpu_custom_call.1} parent=5 // pred_check_branch
        %1528 = sbr.rel (%p1526) target = $region56
      $region55: #{tpu_custom_call.1} parent=5 // pred_region
        %s1529 = ssub.s32 %s14, 2
        // Predicated region
        $region57: #{tpu_custom_call.1} parent=55 // pred_check
          %p1530 = pneg %p177
        $region58: #{tpu_custom_call.1} parent=55 // pred_check_branch
          %1532 = sbr.rel (%p1530) target = $region60
        $region59: #{tpu_custom_call.1} parent=55 // pred_region
          %s1533 = sand.u32 %s162, 1
          %s1534 = scalar_lea.sflag [#allocation4], %s1533
          %s1535 = sand.u32 %s162, 1
          %s1536 = smul.addr %s1535, 8
          %s1537 = scalar_lea.vmem [#allocation3], %s1536
          %1538 = dma.done %s1534, 128
        $region60: #{tpu_custom_call.1} parent=55 // pred_fallthru
          _
      $region56: #{tpu_custom_call.1} parent=5 // pred_fallthru
        _
    $region6: #{tpu_custom_call.1} parent=1 // loop_footer
      %s18 = sadd.s32 1, %s14
    $region7: #{tpu_custom_call.1} parent=1 // loop_footer_branch
      %13 = sbr.rel target = $region3
    $region8: #{tpu_custom_call.1} parent=1 // loop_exit
      _
    %1539 = vsyncpa [#allocation4], 1
    %s1540 = scalar_lea.sflag [#allocation4], 1
    %1541 = vsyncpa %s1540, 1

</llo_original>
